<compile_context>
chip_gen: v7x
topology: tpu7x:2x2x1
jax: 0.10.0
libtpu: 0.0.40
codegen_flags: <defaults>
</compile_context>

<pallas_src>
import jax
import jax.numpy as jnp
from jax.experimental import pallas as pl
from jax.experimental.pallas import tpu as pltpu


def _tsn_fused_kernel(x_ref, wc_ref, bc_ref, wf_ref, bf_ref, out_ref):
    """One grid step processes Vb videos.

    x_ref:   (Vb, T, cin, P) f32  -- NCHW-flattened clips (P = H*W, lane-dense)
    wc_ref:  (cin, F)        bf16 -- synthetic 1x1 conv-stem weight
    bc_ref:  (1, F)          f32  -- conv bias
    wf_ref:  (F, Cp)         bf16 -- new_fc weight, lane-padded to Cp
    bf_ref:  (1, Cp)         f32  -- new_fc bias, lane-padded
    out_ref: (Vb, 1, Cp)     f32  -- avg-consensus logits per video
    """
    Vb, T, cin, P = x_ref.shape
    F_dim = wc_ref.shape[1]

    # Loop-invariant loads / broadcasts hoisted out of the unrolled loops
    # (JAX does not CSE broadcast_in_dim; without this the T-loop would emit
    #  T redundant (1,F)->(P,F) broadcasts).
    wc = wc_ref[...]                                        # (cin, F) bf16
    bc = jnp.broadcast_to(bc_ref[...], (P, F_dim))          # (P, F)   f32
    wf = wf_ref[...].astype(jnp.float32)                    # (F, Cp)  bf16 -> f32, once
    bf = bf_ref[...]                                        # (1, Cp)  f32
    inv_tp = 1.0 / float(T * P)

    for v in range(Vb):                                     # static unroll over videos in block
        acc = jnp.zeros((1, F_dim), jnp.float32)
        # Static unroll over the T segment-clips: one transposed-LHS MXU matmul each.
        # TODO(synk): collapsing the T matmuls into one (cin, T*P) contraction needs an
        # upstream (t,c)->(c,t) layout change or an extra host/in-kernel transpose; with
        # the NCHW input mandated by TSN.forward it is not free, so per-segment matmuls stay.
        for t in range(T):
            xt = x_ref[v, t].astype(jnp.bfloat16)           # f32 -> bf16 in-kernel (VPU slot)
            h = jax.lax.dot_general(                        # (P, F) = xt^T @ wc, f32 accum
                xt, wc,
                dimension_numbers=(((0,), (0,)), ((), ())),
                preferred_element_type=jnp.float32)
            h = jnp.maximum(h + bc, 0.0)                    # bias + ReLU (f32 VPU, safe on v5e)
            acc = acc + jnp.sum(h, axis=0, keepdims=True)   # running pooled sum (XLU)
        # mean over all T*P pixels == AdaptiveAvgPool2d(1) per clip + avg consensus over T
        vfeat = acc * inv_tp                                # (1, F)
        # new_fc applied once per video (consensus hoisted before the linear layer; exact)
        logits = jnp.dot(vfeat, wf, preferred_element_type=jnp.float32) + bf
        out_ref[v] = logits.astype(out_ref.dtype)


def prepare_params(params):
    """One-time parameter prep (kept OUT of the per-forward path): dtype casts and
    lane-padding of the fc slab so the kernel's final store is an unmasked vst."""
    C_cls = params["wf"].shape[1]
    C_pad = ((C_cls + 127) // 128) * 128
    prep = {
        "wc": params["wc"].astype(jnp.bfloat16),
        "bc": params["bc"].astype(jnp.float32).reshape(1, -1),
        "wf": jnp.pad(params["wf"].astype(jnp.bfloat16), ((0, 0), (0, C_pad - C_cls))),
        "bf": jnp.pad(params["bf"].astype(jnp.float32).reshape(1, -1),
                      ((0, 0), (0, C_pad - C_cls))),
    }
    return prep, C_cls


def _default_videos_per_step(batch):
    """Single-TC chips (v5e/v6e): fold all videos into one grid step (per-step overhead
    dominates at these shapes). Multi-TC chips (v7x 2 TC/chip, v4/v5p megacore): one
    video per step so the 'parallel' grid axis shards across cores."""
    try:
        kind = jax.devices()[0].device_kind.lower()
    except Exception:
        kind = ""
    single_tc = ("lite" in kind) or ("v5e" in kind) or ("v6e" in kind)
    # TODO(synk): at real TDN shapes cap videos_per_step by the per-video VMEM footprint
    # instead of folding the whole batch.
    return batch if single_tc else 1


def tsn_forward(x_nchw, prep, num_class, num_segments, videos_per_step=1):
    """x_nchw: (B, num_segments * sample_len*5, H, W) float32, NCHW like PyTorch."""
    B, Ctot, H, W = x_nchw.shape
    cin = prep["wc"].shape[0]              # sample_len * 5  (=15 for RGB, new_length=1)
    assert Ctot == num_segments * cin
    P = H * W
    F_dim = prep["wc"].shape[1]
    C_pad = prep["wf"].shape[1]
    Vb = int(videos_per_step)
    assert B % Vb == 0

    # input.view((-1, sample_len*5, H, W)) -> (B, T, cin, P): pure reshape of the NCHW
    # layout (no transpose, no dtype cast -> no extra HBM round trip for x).
    x = x_nchw.reshape(B, num_segments, cin, P)

    out = pl.pallas_call(
        _tsn_fused_kernel,
        out_shape=jax.ShapeDtypeStruct((B, 1, C_pad), jnp.float32),
        grid=(B // Vb,),
        in_specs=[
            pl.BlockSpec((Vb, num_segments, cin, P), lambda b: (b, 0, 0, 0)),
            pl.BlockSpec((cin, F_dim), lambda b: (0, 0)),
            pl.BlockSpec((1, F_dim), lambda b: (0, 0)),
            pl.BlockSpec((F_dim, C_pad), lambda b: (0, 0)),
            pl.BlockSpec((1, C_pad), lambda b: (0, 0)),
        ],
        out_specs=pl.BlockSpec((Vb, 1, C_pad), lambda b: (b, 0, 0)),
        compiler_params=pltpu.CompilerParams(
            dimension_semantics=("parallel",)),
    )(x, prep["wc"], prep["bc"], prep["wf"], prep["bf"])

    return out.reshape(B, C_pad)[:, :num_class]


def _reference(x_nchw, params, num_segments):
    """Pure-JAX reference with matched numerics (bf16 x/wc/wf, f32 accumulation)."""
    B, Ctot, H, W = x_nchw.shape
    cin = params["wc"].shape[0]
    P = H * W
    xb = x_nchw.reshape(B * num_segments, cin, P).astype(jnp.bfloat16)
    wcb = params["wc"].astype(jnp.bfloat16)
    h = jax.lax.dot_general(xb, wcb,
                            dimension_numbers=(((1,), (0,)), ((), ())),
                            preferred_element_type=jnp.float32)          # (N, P, F)
    h = jnp.maximum(h + params["bc"], 0.0)                                # bias + ReLU
    feat = jnp.mean(h, axis=1)                                            # AdaptiveAvgPool2d(1)
    wf32 = params["wf"].astype(jnp.bfloat16).astype(jnp.float32)          # match kernel rounding
    logits = jnp.dot(feat, wf32,
                     precision=jax.lax.Precision.HIGHEST) + params["bf"]  # new_fc
    logits = logits.reshape(B, num_segments, -1)
    return jnp.mean(logits, axis=1)                                       # avg consensus


if __name__ == "__main__":
    # Small, TSN-consistent shapes:
    #   RGB modality, new_length=1 -> sample_len*5 = 15 input channels per clip
    #   num_segments = 4, batch (videos) = 2 -> NCHW input (2, 60, 16, 16)
    B = 2
    num_segments = 4
    cin = 15                  # sample_len * 5
    H = W = 16
    F_dim = 128               # synthetic backbone feature dim (ResNet would be 2048)
    num_class = 32

    key = jax.random.PRNGKey(0)
    kx, kwc, kwf = jax.random.split(key, 3)

    x = jax.random.normal(kx, (B, num_segments * cin, H, W), dtype=jnp.float32)

    params = {
        # synthetic conv-stem weights (deterministic)
        "wc": 0.05 * jax.random.normal(kwc, (cin, F_dim), dtype=jnp.float32),
        "bc": jnp.zeros((1, F_dim), dtype=jnp.float32),
        # new_fc: normal_(std=0.001), bias = 0  (as in _prepare_tsn)
        "wf": 0.001 * jax.random.normal(kwf, (F_dim, num_class), dtype=jnp.float32),
        "bf": jnp.zeros((1, num_class), dtype=jnp.float32),
    }

    prep, n_cls = prepare_params(params)
    vps = _default_videos_per_step(B)

    out = jax.block_until_ready(
        tsn_forward(x, prep, n_cls, num_segments, videos_per_step=vps))
    ref = jax.block_until_ready(_reference(x, params, num_segments))

    assert out.shape == (B, num_class), out.shape
    max_err = float(jnp.max(jnp.abs(out - ref)))
    assert jnp.allclose(out, ref, atol=1e-4, rtol=1e-4), max_err
    print("KERNEL_OK")
</pallas_src>

<mosaic_0001>
module attributes {stable_mosaic.version = 11 : i64} {
  func.func @_tsn_fused_kernel(%arg0: i32, %arg1: memref<1x4x15x256xf32, #tpu.memory_space<vmem>>, %arg2: memref<15x128xbf16, #tpu.memory_space<vmem>>, %arg3: memref<1x128xf32, #tpu.memory_space<vmem>>, %arg4: memref<128x128xbf16, #tpu.memory_space<vmem>>, %arg5: memref<1x128xf32, #tpu.memory_space<vmem>>, %arg6: memref<1x1x128xf32, #tpu.memory_space<vmem>>) attributes {dimension_semantics = [#tpu.dimension_semantics<parallel>], iteration_bounds = array<i64: 2>, scalar_prefetch = 0 : i64, scratch_operands = 0 : i64, tpu.core_type = #tpu.core_type<tc>, window_params = [{transform_indices = @transform_0, window_bounds = array<i64: 1, 4, 15, 256>}, {pipeline_mode = #tpu.pipeline_mode<synchronous>, transform_indices = @transform_1, window_bounds = array<i64: 15, 128>}, {pipeline_mode = #tpu.pipeline_mode<synchronous>, transform_indices = @transform_2, window_bounds = array<i64: 1, 128>}, {pipeline_mode = #tpu.pipeline_mode<synchronous>, transform_indices = @transform_3, window_bounds = array<i64: 128, 128>}, {pipeline_mode = #tpu.pipeline_mode<synchronous>, transform_indices = @transform_4, window_bounds = array<i64: 1, 128>}, {transform_indices = @transform_5, window_bounds = array<i64: 1, 1, 128>}]} {
    %c0 = arith.constant 0 : index
    %c0_0 = arith.constant 0 : index
    %0 = vector.load %arg2[%c0, %c0_0] : memref<15x128xbf16, #tpu.memory_space<vmem>>, vector<15x128xbf16>
    %c0_1 = arith.constant 0 : index
    %c0_2 = arith.constant 0 : index
    %1 = vector.load %arg3[%c0_1, %c0_2] : memref<1x128xf32, #tpu.memory_space<vmem>>, vector<1x128xf32>
    %2 = vector.shape_cast %1 : vector<1x128xf32> to vector<1x128xf32>
    %3 = vector.broadcast %2 : vector<1x128xf32> to vector<256x128xf32>
    %c0_3 = arith.constant 0 : index
    %c0_4 = arith.constant 0 : index
    %4 = vector.load %arg4[%c0_3, %c0_4] : memref<128x128xbf16, #tpu.memory_space<vmem>>, vector<128x128xbf16>
    %5 = arith.extf %4 : vector<128x128xbf16> to vector<128x128xf32>
    %c0_5 = arith.constant 0 : index
    %c0_6 = arith.constant 0 : index
    %6 = vector.load %arg5[%c0_5, %c0_6] : memref<1x128xf32, #tpu.memory_space<vmem>>, vector<1x128xf32>
    %cst = arith.constant 0.000000e+00 : f32
    %7 = vector.broadcast %cst : f32 to vector<1x128xf32>
    %c0_7 = arith.constant 0 : index
    %c0_8 = arith.constant 0 : index
    %c0_9 = arith.constant 0 : index
    %c0_10 = arith.constant 0 : index
    %8 = vector.load %arg1[%c0_7, %c0_8, %c0_9, %c0_10] : memref<1x4x15x256xf32, #tpu.memory_space<vmem>>, vector<1x1x15x256xf32>
    %9 = vector.shape_cast %8 : vector<1x1x15x256xf32> to vector<15x256xf32>
    %10 = arith.truncf %9 : vector<15x256xf32> to vector<15x256xbf16>
    %cst_11 = arith.constant dense<0.000000e+00> : vector<256x128xf32>
    %11 = tpu.matmul %10, %0, %cst_11 {dimension_numbers = #tpu.dot_dimension_numbers<[0], [0], [1], [1], [0, 1, 1, 1], [], []>} : vector<15x256xbf16>, vector<15x128xbf16>, vector<256x128xf32> -> vector<256x128xf32>
    %12 = arith.addf %11, %3 : vector<256x128xf32>
    %cst_12 = arith.constant 0.000000e+00 : f32
    %13 = vector.broadcast %cst_12 : f32 to vector<256x128xf32>
    %14 = arith.maximumf %12, %13 : vector<256x128xf32>
    %cst_13 = arith.constant dense<0.000000e+00> : vector<128xf32>
    %15 = vector.multi_reduction <add>, %14, %cst_13 [0] : vector<256x128xf32> to vector<128xf32>
    %16 = vector.shape_cast %15 : vector<128xf32> to vector<1x128xf32>
    %17 = arith.addf %7, %16 : vector<1x128xf32>
    %c0_14 = arith.constant 0 : index
    %c1 = arith.constant 1 : index
    %c0_15 = arith.constant 0 : index
    %c0_16 = arith.constant 0 : index
    %18 = vector.load %arg1[%c0_14, %c1, %c0_15, %c0_16] : memref<1x4x15x256xf32, #tpu.memory_space<vmem>>, vector<1x1x15x256xf32>
    %19 = vector.shape_cast %18 : vector<1x1x15x256xf32> to vector<15x256xf32>
    %20 = arith.truncf %19 : vector<15x256xf32> to vector<15x256xbf16>
    %cst_17 = arith.constant dense<0.000000e+00> : vector<256x128xf32>
    %21 = tpu.matmul %20, %0, %cst_17 {dimension_numbers = #tpu.dot_dimension_numbers<[0], [0], [1], [1], [0, 1, 1, 1], [], []>} : vector<15x256xbf16>, vector<15x128xbf16>, vector<256x128xf32> -> vector<256x128xf32>
    %22 = arith.addf %21, %3 : vector<256x128xf32>
    %cst_18 = arith.constant 0.000000e+00 : f32
    %23 = vector.broadcast %cst_18 : f32 to vector<256x128xf32>
    %24 = arith.maximumf %22, %23 : vector<256x128xf32>
    %cst_19 = arith.constant dense<0.000000e+00> : vector<128xf32>
    %25 = vector.multi_reduction <add>, %24, %cst_19 [0] : vector<256x128xf32> to vector<128xf32>
    %26 = vector.shape_cast %25 : vector<128xf32> to vector<1x128xf32>
    %27 = arith.addf %17, %26 : vector<1x128xf32>
    %c0_20 = arith.constant 0 : index
    %c2 = arith.constant 2 : index
    %c0_21 = arith.constant 0 : index
    %c0_22 = arith.constant 0 : index
    %28 = vector.load %arg1[%c0_20, %c2, %c0_21, %c0_22] : memref<1x4x15x256xf32, #tpu.memory_space<vmem>>, vector<1x1x15x256xf32>
    %29 = vector.shape_cast %28 : vector<1x1x15x256xf32> to vector<15x256xf32>
    %30 = arith.truncf %29 : vector<15x256xf32> to vector<15x256xbf16>
    %cst_23 = arith.constant dense<0.000000e+00> : vector<256x128xf32>
    %31 = tpu.matmul %30, %0, %cst_23 {dimension_numbers = #tpu.dot_dimension_numbers<[0], [0], [1], [1], [0, 1, 1, 1], [], []>} : vector<15x256xbf16>, vector<15x128xbf16>, vector<256x128xf32> -> vector<256x128xf32>
    %32 = arith.addf %31, %3 : vector<256x128xf32>
    %cst_24 = arith.constant 0.000000e+00 : f32
    %33 = vector.broadcast %cst_24 : f32 to vector<256x128xf32>
    %34 = arith.maximumf %32, %33 : vector<256x128xf32>
    %cst_25 = arith.constant dense<0.000000e+00> : vector<128xf32>
    %35 = vector.multi_reduction <add>, %34, %cst_25 [0] : vector<256x128xf32> to vector<128xf32>
    %36 = vector.shape_cast %35 : vector<128xf32> to vector<1x128xf32>
    %37 = arith.addf %27, %36 : vector<1x128xf32>
    %c0_26 = arith.constant 0 : index
    %c3 = arith.constant 3 : index
    %c0_27 = arith.constant 0 : index
    %c0_28 = arith.constant 0 : index
    %38 = vector.load %arg1[%c0_26, %c3, %c0_27, %c0_28] : memref<1x4x15x256xf32, #tpu.memory_space<vmem>>, vector<1x1x15x256xf32>
    %39 = vector.shape_cast %38 : vector<1x1x15x256xf32> to vector<15x256xf32>
    %40 = arith.truncf %39 : vector<15x256xf32> to vector<15x256xbf16>
    %cst_29 = arith.constant dense<0.000000e+00> : vector<256x128xf32>
    %41 = tpu.matmul %40, %0, %cst_29 {dimension_numbers = #tpu.dot_dimension_numbers<[0], [0], [1], [1], [0, 1, 1, 1], [], []>} : vector<15x256xbf16>, vector<15x128xbf16>, vector<256x128xf32> -> vector<256x128xf32>
    %42 = arith.addf %41, %3 : vector<256x128xf32>
    %cst_30 = arith.constant 0.000000e+00 : f32
    %43 = vector.broadcast %cst_30 : f32 to vector<256x128xf32>
    %44 = arith.maximumf %42, %43 : vector<256x128xf32>
    %cst_31 = arith.constant dense<0.000000e+00> : vector<128xf32>
    %45 = vector.multi_reduction <add>, %44, %cst_31 [0] : vector<256x128xf32> to vector<128xf32>
    %46 = vector.shape_cast %45 : vector<128xf32> to vector<1x128xf32>
    %47 = arith.addf %37, %46 : vector<1x128xf32>
    %cst_32 = arith.constant 9.765625E-4 : f32
    %48 = vector.broadcast %cst_32 : f32 to vector<1x128xf32>
    %49 = arith.mulf %47, %48 : vector<1x128xf32>
    %cst_33 = arith.constant dense<0.000000e+00> : vector<1x128xf32>
    %50 = tpu.matmul %49, %5, %cst_33 {dimension_numbers = #tpu.dot_dimension_numbers<[1], [0], [0], [1], [0, 0, 1, 1], [], []>} : vector<1x128xf32>, vector<128x128xf32>, vector<1x128xf32> -> vector<1x128xf32>
    %51 = arith.addf %50, %6 : vector<1x128xf32>
    %c0_34 = arith.constant 0 : index
    %c0_35 = arith.constant 0 : index
    %c0_36 = arith.constant 0 : index
    %52 = vector.load %arg6[%c0_34, %c0_35, %c0_36] : memref<1x1x128xf32, #tpu.memory_space<vmem>>, vector<1x1x128xf32>
    %53 = vector.shape_cast %52 : vector<1x1x128xf32> to vector<1x128xf32>
    %54 = vector.shape_cast %51 : vector<1x128xf32> to vector<1x1x128xf32>
    tpu.vector_store %arg6[%c0_34, %c0_35, %c0_36], %54 {strides = array<i32>} : memref<1x1x128xf32, #tpu.memory_space<vmem>>, vector<1x1x128xf32>,
    return
  }
  func.func @transform_0(%arg0: i32) -> (i32, i32, i32, i32) {
    %c0_i32 = arith.constant 0 : i32
    %c0_i32_0 = arith.constant 0 : i32
    %c0_i32_1 = arith.constant 0 : i32
    %c0_i32_2 = arith.constant 0 : i32
    return %arg0, %c0_i32, %c0_i32_0, %c0_i32_1 : i32, i32, i32, i32
  }
  func.func @transform_1(%arg0: i32) -> (i32, i32) {
    %c0_i32 = arith.constant 0 : i32
    %c0_i32_0 = arith.constant 0 : i32
    %c0_i32_1 = arith.constant 0 : i32
    return %c0_i32, %c0_i32_0 : i32, i32
  }
  func.func @transform_2(%arg0: i32) -> (i32, i32) {
    %c0_i32 = arith.constant 0 : i32
    %c0_i32_0 = arith.constant 0 : i32
    %c0_i32_1 = arith.constant 0 : i32
    return %c0_i32, %c0_i32_0 : i32, i32
  }
  func.func @transform_3(%arg0: i32) -> (i32, i32) {
    %c0_i32 = arith.constant 0 : i32
    %c0_i32_0 = arith.constant 0 : i32
    %c0_i32_1 = arith.constant 0 : i32
    return %c0_i32, %c0_i32_0 : i32, i32
  }
  func.func @transform_4(%arg0: i32) -> (i32, i32) {
    %c0_i32 = arith.constant 0 : i32
    %c0_i32_0 = arith.constant 0 : i32
    %c0_i32_1 = arith.constant 0 : i32
    return %c0_i32, %c0_i32_0 : i32, i32
  }
  func.func @transform_5(%arg0: i32) -> (i32, i32, i32) {
    %c0_i32 = arith.constant 0 : i32
    %c0_i32_0 = arith.constant 0 : i32
    %c0_i32_1 = arith.constant 0 : i32
    return %arg0, %c0_i32, %c0_i32_0 : i32, i32, i32
  }
}

</mosaic_0001>

<llo_original>
// kernel: tpu_custom_call.1
$region0: #{tpu_custom_call.1}
  #allocation0 [shape = 'u32[]', space=smem, size = 0x4, offset = 0x4, fixed_abs, tag = 'smem constant byte address 0x4 - core index']
  #allocation1 [shape = 'u32[144,128]{1,0:T(1,128)}', space=vmem, size = 0x12000, scoped, tag = 'internal scratch']
  %s0 = inlined_call_operand.vmem [shape: f32[2,4,15,256], index: 0, kind: input, shape index: {}]
  %s1 = inlined_call_operand.vmem [shape: bf16[15,128], index: 1, kind: input, shape index: {}]
  %s2 = inlined_call_operand.vmem [shape: f32[1,128], index: 2, kind: input, shape index: {}]
  %s3 = inlined_call_operand.vmem [shape: bf16[128,128], index: 3, kind: input, shape index: {}]
  %s4 = inlined_call_operand.vmem [shape: f32[1,128], index: 4, kind: input, shape index: {}]
  %s5 = inlined_call_operand.hbm [shape: f32[2,1,128], index: 5, kind: output, shape index: {}]
  %s6 = sld [smem:[#allocation0]]
  $region53: #{tpu_custom_call.1} parent=0
    _
  %s8 = ssub.s32 1, %s6
  %s9 = scalar_select 0, %s8, %s6
  $region1: #{tpu_custom_call.1} parent=0
    #allocation2 [shape = 'u8[1024]{0}', space=vmem, size = 0x400, scoped, tag = 'output window, operand 0']
    #allocation3 [shape = 's32[2]{0}', space=sflag, size = 0x8, scoped, tag = 'scoped memory for tpu_custom_call.1']
    %10 = vsyncpa [#allocation3], 0
    %s11 = scalar_lea.sflag [#allocation3], 1
    %12 = vsyncpa %s11, 0
    loop: start=0, step=1, limit=4
    $region2: #{tpu_custom_call.1} parent=1 // loop_pre_header
      _
    $region3: #{tpu_custom_call.1} parent=1 // loop_header
      %s14 = sphi 0, %s18
      %p15 = scmp.ge.s32.totalorder %s14, 4
      %s24 = sphi 0, %s26
      %s27 = sphi 0, %s24
      %s28 = sphi 0, %s27
      %s44 = sphi 0, %s28
      %s48 = sphi 0, %s48
      %s50 = sphi 0, %s48
      %s51 = sphi 0, %s50
      %s65 = sphi 0, %s51
      %s69 = sphi 0, %s69
      %s71 = sphi 0, %s69
      %s72 = sphi 0, %s71
      %s86 = sphi 0, %s72
      %s90 = sphi 0, %s90
      %s92 = sphi 0, %s90
      %s93 = sphi 0, %s92
      %s107 = sphi 0, %s93
      %s111 = sphi 0, %s111
      %s113 = sphi 0, %s111
      %s114 = sphi 0, %s113
      %s128 = sphi 0, %s114
      %s134 = sphi 0, %s136
      %s137 = sphi 0, %s134
      %s138 = sphi 0, %s137
      %s154 = sphi 0, %s138
    $region4: #{tpu_custom_call.1} parent=1 // loop_header_branch
      %17 = sbr.rel (%p15) target = $region8
    $region5: #{tpu_custom_call.1} parent=1 // loop_body
      %s19 = ssub.s32 %s14, 1
      %s20 = ssub.s32 %s14, 2
      %s21 = sadd.s32 %s14, 1
      %s22 = ssub.s32 %s14, %s21
      %p23 = scmp.eq.s32.totalorder %s22, 0
      %s25 = sadd.s32 %s24, 1
      %s26 = scalar_select %p23, %s24, %s25
      %p29 = pneg %p23
      %p30 = scmp.eq.s32.totalorder %s14, 1
      %p31 = por %p29, %p30
      %p32 = scmp.ne.s32.totalorder %s24, %s27
      %p33 = scmp.eq.s32.totalorder %s14, 0
      %p34 = por %p32, %p33
      %p35 = scmp.ne.s32.totalorder %s24, %s27
      %p36 = scmp.eq.s32.totalorder %s19, 1
      %p37 = por %p35, %p36
      %p38 = scmp.ne.s32.totalorder %s27, %s28
      %p39 = scmp.eq.s32.totalorder %s19, 0
      %p40 = por %p38, %p39
      %p41 = scmp.ne.s32.totalorder %s27, %s28
      %p42 = scmp.eq.s32.totalorder %s20, 1
      %p43 = por %p41, %p42
      %p45 = scmp.ne.s32.totalorder %s28, %s44
      %p46 = scmp.eq.s32.totalorder %s20, 0
      %p47 = por %p45, %p46
      %s49 = sadd.s32 %s48, 1
      %p52 = scmp.eq.s32.totalorder %s14, 1
      %p53 = scmp.ne.s32.totalorder %s48, %s50
      %p54 = scmp.eq.s32.totalorder %s14, 0
      %p55 = por %p53, %p54
      %p56 = scmp.ne.s32.totalorder %s48, %s50
      %p57 = scmp.eq.s32.totalorder %s19, 1
      %p58 = por %p56, %p57
      %p59 = scmp.ne.s32.totalorder %s50, %s51
      %p60 = scmp.eq.s32.totalorder %s19, 0
      %p61 = por %p59, %p60
      %p62 = scmp.ne.s32.totalorder %s50, %s51
      %p63 = scmp.eq.s32.totalorder %s20, 1
      %p64 = por %p62, %p63
      %p66 = scmp.ne.s32.totalorder %s51, %s65
      %p67 = scmp.eq.s32.totalorder %s20, 0
      %p68 = por %p66, %p67
      %s70 = sadd.s32 %s69, 1
      %p73 = scmp.eq.s32.totalorder %s14, 1
      %p74 = scmp.ne.s32.totalorder %s69, %s71
      %p75 = scmp.eq.s32.totalorder %s14, 0
      %p76 = por %p74, %p75
      %p77 = scmp.ne.s32.totalorder %s69, %s71
      %p78 = scmp.eq.s32.totalorder %s19, 1
      %p79 = por %p77, %p78
      %p80 = scmp.ne.s32.totalorder %s71, %s72
      %p81 = scmp.eq.s32.totalorder %s19, 0
      %p82 = por %p80, %p81
      %p83 = scmp.ne.s32.totalorder %s71, %s72
      %p84 = scmp.eq.s32.totalorder %s20, 1
      %p85 = por %p83, %p84
      %p87 = scmp.ne.s32.totalorder %s72, %s86
      %p88 = scmp.eq.s32.totalorder %s20, 0
      %p89 = por %p87, %p88
      %s91 = sadd.s32 %s90, 1
      %p94 = scmp.eq.s32.totalorder %s14, 1
      %p95 = scmp.ne.s32.totalorder %s90, %s92
      %p96 = scmp.eq.s32.totalorder %s14, 0
      %p97 = por %p95, %p96
      %p98 = scmp.ne.s32.totalorder %s90, %s92
      %p99 = scmp.eq.s32.totalorder %s19, 1
      %p100 = por %p98, %p99
      %p101 = scmp.ne.s32.totalorder %s92, %s93
      %p102 = scmp.eq.s32.totalorder %s19, 0
      %p103 = por %p101, %p102
      %p104 = scmp.ne.s32.totalorder %s92, %s93
      %p105 = scmp.eq.s32.totalorder %s20, 1
      %p106 = por %p104, %p105
      %p108 = scmp.ne.s32.totalorder %s93, %s107
      %p109 = scmp.eq.s32.totalorder %s20, 0
      %p110 = por %p108, %p109
      %s112 = sadd.s32 %s111, 1
      %p115 = scmp.eq.s32.totalorder %s14, 1
      %p116 = scmp.ne.s32.totalorder %s111, %s113
      %p117 = scmp.eq.s32.totalorder %s14, 0
      %p118 = por %p116, %p117
      %p119 = scmp.ne.s32.totalorder %s111, %s113
      %p120 = scmp.eq.s32.totalorder %s19, 1
      %p121 = por %p119, %p120
      %p122 = scmp.ne.s32.totalorder %s113, %s114
      %p123 = scmp.eq.s32.totalorder %s19, 0
      %p124 = por %p122, %p123
      %p125 = scmp.ne.s32.totalorder %s113, %s114
      %p126 = scmp.eq.s32.totalorder %s20, 1
      %p127 = por %p125, %p126
      %p129 = scmp.ne.s32.totalorder %s114, %s128
      %p130 = scmp.eq.s32.totalorder %s20, 0
      %p131 = por %p129, %p130
      %s132 = ssub.s32 %s14, %s21
      %p133 = scmp.eq.s32.totalorder %s132, 0
      %s135 = sadd.s32 %s134, 1
      %s136 = scalar_select %p133, %s134, %s135
      %p139 = pneg %p133
      %p140 = scmp.eq.s32.totalorder %s14, 1
      %p141 = por %p139, %p140
      %p142 = scmp.ne.s32.totalorder %s134, %s137
      %p143 = scmp.eq.s32.totalorder %s14, 0
      %p144 = por %p142, %p143
      %p145 = scmp.ne.s32.totalorder %s134, %s137
      %p146 = scmp.eq.s32.totalorder %s19, 1
      %p147 = por %p145, %p146
      %p148 = scmp.ne.s32.totalorder %s137, %s138
      %p149 = scmp.eq.s32.totalorder %s19, 0
      %p150 = por %p148, %p149
      %p151 = scmp.ne.s32.totalorder %s137, %s138
      %p152 = scmp.eq.s32.totalorder %s20, 1
      %p153 = por %p151, %p152
      %p155 = scmp.ne.s32.totalorder %s138, %s154
      %p156 = scmp.eq.s32.totalorder %s20, 0
      %p157 = por %p155, %p156
      %p158 = scmp.le.s32.totalorder 1, %s14
      %p159 = scmp.lt.s32.totalorder %s14, 3
      %p160 = pnand %p158, %p159
      %p161 = pneg %p160
      // Predicated region
      $region9: #{tpu_custom_call.1} parent=5 // pred_check
        _
      $region10: #{tpu_custom_call.1} parent=5 // pred_check_branch
        %163 = sbr.rel (%p160) target = $region12
      $region11: #{tpu_custom_call.1} parent=5 // pred_region
        %s164 = ssub.s32 %s14, 1
        // Predicated region
        $region13: #{tpu_custom_call.1} parent=11 // pred_check
          %p165 = pneg %p61
        $region14: #{tpu_custom_call.1} parent=11 // pred_check_branch
          %167 = sbr.rel (%p165) target = $region16
        $region15: #{tpu_custom_call.1} parent=11 // pred_region
          _
        $region16: #{tpu_custom_call.1} parent=11 // pred_fallthru
          _
        // Predicated region
        $region17: #{tpu_custom_call.1} parent=11 // pred_check
          %p168 = pneg %p82
        $region18: #{tpu_custom_call.1} parent=11 // pred_check_branch
          %170 = sbr.rel (%p168) target = $region20
        $region19: #{tpu_custom_call.1} parent=11 // pred_region
          _
        $region20: #{tpu_custom_call.1} parent=11 // pred_fallthru
          _
        // Predicated region
        $region21: #{tpu_custom_call.1} parent=11 // pred_check
          %p171 = pneg %p103
        $region22: #{tpu_custom_call.1} parent=11 // pred_check_branch
          %173 = sbr.rel (%p171) target = $region24
        $region23: #{tpu_custom_call.1} parent=11 // pred_region
          _
        $region24: #{tpu_custom_call.1} parent=11 // pred_fallthru
          _
        // Predicated region
        $region25: #{tpu_custom_call.1} parent=11 // pred_check
          %p174 = pneg %p124
        $region26: #{tpu_custom_call.1} parent=11 // pred_check_branch
          %176 = sbr.rel (%p174) target = $region28
        $region27: #{tpu_custom_call.1} parent=11 // pred_region
          _
        $region28: #{tpu_custom_call.1} parent=11 // pred_fallthru
          _
      $region12: #{tpu_custom_call.1} parent=5 // pred_fallthru
        _
      %p177 = scmp.lt.s32.totalorder %s14, 2
      // Predicated region
      $region29: #{tpu_custom_call.1} parent=5 // pred_check
        %p178 = pneg %p177
      $region30: #{tpu_custom_call.1} parent=5 // pred_check_branch
        %180 = sbr.rel (%p178) target = $region32
      $region31: #{tpu_custom_call.1} parent=5 // pred_region
        // Predicated region
        $region33: #{tpu_custom_call.1} parent=31 // pred_check
          %p181 = pneg %p34
        $region34: #{tpu_custom_call.1} parent=31 // pred_check_branch
          %183 = sbr.rel (%p181) target = $region36
        $region35: #{tpu_custom_call.1} parent=31 // pred_region
          %p184 = scmp.lt.s32.totalorder %s14, 1
          %s185 = scalar_select %p184, %s14, 1
          %s186 = smul.addr %s185, 16
          %s187 = smul.addr %s186, 8
          %s188 = scalar_lea.vmem %s0, %s187
        $region36: #{tpu_custom_call.1} parent=31 // pred_fallthru
          _
      $region32: #{tpu_custom_call.1} parent=5 // pred_fallthru
        _
      %p189 = scmp.le.s32.totalorder 1, %s14
      %p190 = scmp.lt.s32.totalorder %s14, 3
      %p191 = pnand %p189, %p190
      %p192 = pneg %p191
      // Predicated region
      $region37: #{tpu_custom_call.1} parent=5 // pred_check
        _
      $region38: #{tpu_custom_call.1} parent=5 // pred_check_branch
        %194 = sbr.rel (%p191) target = $region40
      $region39: #{tpu_custom_call.1} parent=5 // pred_region
        %s195 = ssub.s32 %s14, 1
        %p196 = scmp.lt.s32.totalorder %s19, 1
        %s197 = scalar_select %p196, %s19, 1
        %s198 = smul.addr %s197, 16
        %s199 = smul.addr %s198, 8
        %s200 = scalar_lea.vmem %s0, %s199
        %p201 = pneg %p40
        %p202 = pneg %p37
        %p203 = pneg %p61
        %p204 = pneg %p58
        %p205 = pneg %p82
        %p206 = pneg %p79
        %p207 = pneg %p103
        %p208 = pneg %p100
        %p209 = pneg %p124
        %p210 = pneg %p121
        %p211 = pneg %p150
        %p212 = pneg %p147
        %s213 = sand.u32 %s137, 1
        %s214 = scalar_lea.sflag [#allocation3], %s213
        %s215 = sand.u32 %s137, 1
        %s216 = scalar_lea.vmem [#allocation2], %s215
        %p217 = scmp.lt.s32.totalorder %s19, 1
        %s218 = scalar_select %p217, %s19, 1
        %s219 = smul.addr %s218, 16
        %s220 = smul.addr %s219, 8
        %s221 = scalar_lea.vmem %s0, %s220
        %v223 = vld [vmem:[%s1] sm:$0xf]
        %v224 = vld [vmem:[%s1 + $0x4] sm:$0xf]
        %v225 = vld [vmem:[%s2] sm:$0x1]
        %v227 = vlaneseq
        %v228 = vshrl.u32 %v227, 7
        %v229 = vsub.s32 0, %v228
        %v230 = vrot.slane %v225, %v229
        %v232 = vld [vmem:[%s3] sm:$0xf]
        %v233 = vld [vmem:[%s3 + $0x4] sm:$0xf]
        %v234 = vld [vmem:[%s3 + $0x8] sm:$0xf]
        %v235 = vld [vmem:[%s3 + $0xc] sm:$0xf]
        %v236 = vld [vmem:[%s3 + $0x10] sm:$0xf]
        %v237 = vld [vmem:[%s3 + $0x14] sm:$0xf]
        %v238 = vld [vmem:[%s3 + $0x18] sm:$0xf]
        %v239 = vld [vmem:[%s3 + $0x1c] sm:$0xf]
        %v240 = vld [vmem:[%s3 + $0x20] sm:$0xf]
        %v241 = vld [vmem:[%s3 + $0x24] sm:$0xf]
        %v242 = vld [vmem:[%s3 + $0x28] sm:$0xf]
        %v243 = vld [vmem:[%s3 + $0x2c] sm:$0xf]
        %v244 = vld [vmem:[%s3 + $0x30] sm:$0xf]
        %v245 = vld [vmem:[%s3 + $0x34] sm:$0xf]
        %v246 = vld [vmem:[%s3 + $0x38] sm:$0xf]
        %v247 = vld [vmem:[%s3 + $0x3c] sm:$0xf]
        %v248 = vunpack.c.l.bf16 %v232
        %v249 = vunpack.c.l.bf16 %v233
        %v250 = vunpack.c.l.bf16 %v234
        %v251 = vunpack.c.l.bf16 %v235
        %v252 = vunpack.c.l.bf16 %v236
        %v253 = vunpack.c.l.bf16 %v237
        %v254 = vunpack.c.l.bf16 %v238
        %v255 = vunpack.c.l.bf16 %v239
        %v256 = vunpack.c.l.bf16 %v240
        %v257 = vunpack.c.l.bf16 %v241
        %v258 = vunpack.c.l.bf16 %v242
        %v259 = vunpack.c.l.bf16 %v243
        %v260 = vunpack.c.l.bf16 %v244
        %v261 = vunpack.c.l.bf16 %v245
        %v262 = vunpack.c.l.bf16 %v246
        %v263 = vunpack.c.l.bf16 %v247
        %v264 = vld [vmem:[%s4] sm:$0x1]
        %v265 = vld [vmem:[%s221] sm:$0xff]
        %v266 = vld [vmem:[%s221 + $0x8] sm:$0xff]
        %v267 = vld [vmem:[%s221 + $0x10] sm:$0x7f]
        %v268 = vld [vmem:[%s221 + $0x18] sm:$0x7f]
        %v269 = vpack.c.bf16 %v267, %v265
        %v270 = vpack.c.bf16 %v268, %v266
        %271 = vxpose.xlu0.c.b16.start [1/8] %v269, 128
        %272 = vxpose.xlu0.c.b16.cont [2/8] 0, 128
        %273 = vxpose.xlu0.c.b16.cont [3/8] 0, 128
        %274 = vxpose.xlu0.c.b16.cont [4/8] 0, 128
        %275 = vxpose.xlu0.c.b16.cont [5/8] 0, 128
        %276 = vxpose.xlu0.c.b16.cont [6/8] 0, 128
        %277 = vxpose.xlu0.c.b16.cont [7/8] 0, 128
        %278 = vxpose.xlu0.c.b16.end [8/8] 0, 128
        %v279 = vpop.trf.xlu0
        %v280 = vpop.trf.xlu0
        %v281 = vpop.trf.xlu0
        %v282 = vpop.trf.xlu0
        %v283 = vpop.trf.xlu0
        %v284 = vpop.trf.xlu0
        %v285 = vpop.trf.xlu0
        %v286 = vpop.trf.xlu0
        %287 = vxpose.xlu0.c.b16.start [1/8] %v270, 128
        %288 = vxpose.xlu0.c.b16.cont [2/8] 0, 128
        %289 = vxpose.xlu0.c.b16.cont [3/8] 0, 128
        %290 = vxpose.xlu0.c.b16.cont [4/8] 0, 128
        %291 = vxpose.xlu0.c.b16.cont [5/8] 0, 128
        %292 = vxpose.xlu0.c.b16.cont [6/8] 0, 128
        %293 = vxpose.xlu0.c.b16.cont [7/8] 0, 128
        %294 = vxpose.xlu0.c.b16.end [8/8] 0, 128
        %v295 = vpop.trf.xlu0
        %v296 = vpop.trf.xlu0
        %v297 = vpop.trf.xlu0
        %v298 = vpop.trf.xlu0
        %v299 = vpop.trf.xlu0
        %v300 = vpop.trf.xlu0
        %v301 = vpop.trf.xlu0
        %v302 = vpop.trf.xlu0
        %v305 = vunpack.c.l.b16 %v223
        %v306 = vunpack.c.l.b16 %v224
        %v307 = vpack.c.b16 %v306, %v305
        %vm308 = vcmask 121856
        %v310 = vsel %vm308, %v279, 0
        %v313 = vsel %vm308, %v280, 0
        %v316 = vsel %vm308, %v281, 0
        %v319 = vsel %vm308, %v282, 0
        %v322 = vsel %vm308, %v283, 0
        %v325 = vsel %vm308, %v284, 0
        %v328 = vsel %vm308, %v285, 0
        %v331 = vsel %vm308, %v286, 0
        %v334 = vsel %vm308, %v295, 0
        %v337 = vsel %vm308, %v296, 0
        %v340 = vsel %vm308, %v297, 0
        %v343 = vsel %vm308, %v298, 0
        %v346 = vsel %vm308, %v299, 0
        %v349 = vsel %vm308, %v300, 0
        %v352 = vsel %vm308, %v301, 0
        %v355 = vsel %vm308, %v302, 0
        %vm357 = vcmask 1046528
        %vm358 = vcmask 1047552
        %v359 = vsel %vm357, 4294967295, 65535
        %v360 = vsel %vm358, %v359, 0
        %v362 = vand.u32 %v307, %v360
        %364 = vmatprep.subr.bf16.mxu0 0
        %365 = vmatpush1.bf16.msra.mxu0 %v362
        %366 = vmatprep.subr.bf16.mxu0 0
        %367 = vmatpush1.bf16.msra.mxu0 0
        %368 = vmatprep.subr.bf16.mxu0 0
        %369 = vmatpush1.bf16.msra.mxu0 0
        %370 = vmatprep.subr.bf16.mxu0 0
        %371 = vmatpush1.bf16.msra.mxu0 0
        %372 = vmatprep.subr.bf16.mxu0 0
        %373 = vmatpush1.bf16.msra.mxu0 0
        %374 = vmatprep.subr.bf16.mxu0 0
        %375 = vmatpush1.bf16.msra.mxu0 0
        %376 = vmatprep.subr.bf16.mxu0 0
        %377 = vmatpush1.bf16.msra.mxu0 0
        %378 = vmatprep.subr.bf16.mxu0 0
        %379 = vmatpush1.bf16.msra.mxu0 0
        %380 = vmatprep.subr.bf16.mxu0 0
        %381 = vmatpush1.bf16.msra.mxu0 0
        %382 = vmatprep.subr.bf16.mxu0 0
        %383 = vmatpush1.bf16.msra.mxu0 0
        %384 = vmatprep.subr.bf16.mxu0 0
        %385 = vmatpush1.bf16.msra.mxu0 0
        %386 = vmatprep.subr.bf16.mxu0 0
        %387 = vmatpush1.bf16.msra.mxu0 0
        %388 = vmatprep.subr.bf16.mxu0 0
        %389 = vmatpush1.bf16.msra.mxu0 0
        %390 = vmatprep.subr.bf16.mxu0 0
        %391 = vmatpush1.bf16.msra.mxu0 0
        %392 = vmatprep.subr.bf16.mxu0 0
        %393 = vmatpush1.bf16.msra.mxu0 0
        %394 = vmatprep.subr.bf16.mxu0 0
        %395 = vmatpush1.bf16.msra.mxu0 0
        %396 = vmatprep.mubr.bf16.mxu0 0
        %397 = vmatmul.mubr.bf16.gmra.mrb[0].mxu0 %v310
        %v398 = vpop.f32.mrb[0].mxu0
        %v399 = vadd.f32 %v230, %v398
        %v400 = vpop.f32.mrb[0].mxu0
        %v401 = vpop.f32.mrb[0].mxu0
        %v402 = vadd.f32 %v230, %v401
        %v403 = vpop.f32.mrb[0].mxu0
        %404 = vmatprep.mubr.bf16.mxu0 0
        %405 = vmatmul.mubr.bf16.gmra.mrb[0].mxu0 %v313
        %v406 = vpop.f32.mrb[0].mxu0
        %v407 = vadd.f32 %v230, %v406
        %v408 = vpop.f32.mrb[0].mxu0
        %v409 = vpop.f32.mrb[0].mxu0
        %v410 = vadd.f32 %v230, %v409
        %v411 = vpop.f32.mrb[0].mxu0
        %412 = vmatprep.mubr.bf16.mxu0 0
        %413 = vmatmul.mubr.bf16.gmra.mrb[0].mxu0 %v316
        %v414 = vpop.f32.mrb[0].mxu0
        %v415 = vadd.f32 %v230, %v414
        %v416 = vpop.f32.mrb[0].mxu0
        %v417 = vpop.f32.mrb[0].mxu0
        %v418 = vadd.f32 %v230, %v417
        %v419 = vpop.f32.mrb[0].mxu0
        %420 = vmatprep.mubr.bf16.mxu0 0
        %421 = vmatmul.mubr.bf16.gmra.mrb[0].mxu0 %v319
        %v422 = vpop.f32.mrb[0].mxu0
        %v423 = vadd.f32 %v230, %v422
        %v424 = vpop.f32.mrb[0].mxu0
        %v425 = vpop.f32.mrb[0].mxu0
        %v426 = vadd.f32 %v230, %v425
        %v427 = vpop.f32.mrb[0].mxu0
        %428 = vmatprep.mubr.bf16.mxu0 0
        %429 = vmatmul.mubr.bf16.gmra.mrb[0].mxu0 %v322
        %v430 = vpop.f32.mrb[0].mxu0
        %v431 = vadd.f32 %v230, %v430
        %v432 = vpop.f32.mrb[0].mxu0
        %v433 = vpop.f32.mrb[0].mxu0
        %v434 = vadd.f32 %v230, %v433
        %v435 = vpop.f32.mrb[0].mxu0
        %436 = vmatprep.mubr.bf16.mxu0 0
        %437 = vmatmul.mubr.bf16.gmra.mrb[0].mxu0 %v325
        %v438 = vpop.f32.mrb[0].mxu0
        %v439 = vadd.f32 %v230, %v438
        %v440 = vpop.f32.mrb[0].mxu0
        %v441 = vpop.f32.mrb[0].mxu0
        %v442 = vadd.f32 %v230, %v441
        %v443 = vpop.f32.mrb[0].mxu0
        %444 = vmatprep.mubr.bf16.mxu0 0
        %445 = vmatmul.mubr.bf16.gmra.mrb[0].mxu0 %v328
        %v446 = vpop.f32.mrb[0].mxu0
        %v447 = vadd.f32 %v230, %v446
        %v448 = vpop.f32.mrb[0].mxu0
        %v449 = vpop.f32.mrb[0].mxu0
        %v450 = vadd.f32 %v230, %v449
        %v451 = vpop.f32.mrb[0].mxu0
        %452 = vmatprep.mubr.bf16.mxu0 0
        %453 = vmatmul.mubr.bf16.gmra.mrb[0].mxu0 %v331
        %v454 = vpop.f32.mrb[0].mxu0
        %v455 = vadd.f32 %v230, %v454
        %v456 = vpop.f32.mrb[0].mxu0
        %v457 = vpop.f32.mrb[0].mxu0
        %v458 = vadd.f32 %v230, %v457
        %v459 = vpop.f32.mrb[0].mxu0
        %460 = vmatprep.mubr.bf16.mxu0 0
        %461 = vmatmul.mubr.bf16.gmra.mrb[0].mxu0 %v334
        %v462 = vpop.f32.mrb[0].mxu0
        %v463 = vadd.f32 %v230, %v462
        %v464 = vpop.f32.mrb[0].mxu0
        %v465 = vpop.f32.mrb[0].mxu0
        %v466 = vadd.f32 %v230, %v465
        %v467 = vpop.f32.mrb[0].mxu0
        %468 = vmatprep.mubr.bf16.mxu0 0
        %469 = vmatmul.mubr.bf16.gmra.mrb[0].mxu0 %v337
        %v470 = vpop.f32.mrb[0].mxu0
        %v471 = vadd.f32 %v230, %v470
        %v472 = vpop.f32.mrb[0].mxu0
        %v473 = vpop.f32.mrb[0].mxu0
        %v474 = vadd.f32 %v230, %v473
        %v475 = vpop.f32.mrb[0].mxu0
        %476 = vmatprep.mubr.bf16.mxu0 0
        %477 = vmatmul.mubr.bf16.gmra.mrb[0].mxu0 %v340
        %v478 = vpop.f32.mrb[0].mxu0
        %v479 = vadd.f32 %v230, %v478
        %v480 = vpop.f32.mrb[0].mxu0
        %v481 = vpop.f32.mrb[0].mxu0
        %v482 = vadd.f32 %v230, %v481
        %v483 = vpop.f32.mrb[0].mxu0
        %484 = vmatprep.mubr.bf16.mxu0 0
        %485 = vmatmul.mubr.bf16.gmra.mrb[0].mxu0 %v343
        %v486 = vpop.f32.mrb[0].mxu0
        %v487 = vadd.f32 %v230, %v486
        %v488 = vpop.f32.mrb[0].mxu0
        %v489 = vpop.f32.mrb[0].mxu0
        %v490 = vadd.f32 %v230, %v489
        %v491 = vpop.f32.mrb[0].mxu0
        %492 = vmatprep.mubr.bf16.mxu0 0
        %493 = vmatmul.mubr.bf16.gmra.mrb[0].mxu0 %v346
        %v494 = vpop.f32.mrb[0].mxu0
        %v495 = vadd.f32 %v230, %v494
        %v496 = vpop.f32.mrb[0].mxu0
        %v497 = vpop.f32.mrb[0].mxu0
        %v498 = vadd.f32 %v230, %v497
        %v499 = vpop.f32.mrb[0].mxu0
        %500 = vmatprep.mubr.bf16.mxu0 0
        %501 = vmatmul.mubr.bf16.gmra.mrb[0].mxu0 %v349
        %v502 = vpop.f32.mrb[0].mxu0
        %v503 = vadd.f32 %v230, %v502
        %v504 = vpop.f32.mrb[0].mxu0
        %v505 = vpop.f32.mrb[0].mxu0
        %v506 = vadd.f32 %v230, %v505
        %v507 = vpop.f32.mrb[0].mxu0
        %508 = vmatprep.mubr.bf16.mxu0 0
        %509 = vmatmul.mubr.bf16.gmra.mrb[0].mxu0 %v352
        %v510 = vpop.f32.mrb[0].mxu0
        %v511 = vadd.f32 %v230, %v510
        %v512 = vpop.f32.mrb[0].mxu0
        %v513 = vpop.f32.mrb[0].mxu0
        %v514 = vadd.f32 %v230, %v513
        %v515 = vpop.f32.mrb[0].mxu0
        %516 = vmatprep.mubr.bf16.mxu0 0
        %517 = vmatmul.mubr.bf16.gmra.mrb[0].mxu0 %v355
        %v518 = vpop.f32.mrb[0].mxu0
        %v519 = vadd.f32 %v230, %v518
        %v520 = vpop.f32.mrb[0].mxu0
        %v521 = vpop.f32.mrb[0].mxu0
        %v522 = vadd.f32 %v230, %v521
        %v523 = vpop.f32.mrb[0].mxu0
        %524 = vdwg.mxu0
        %v525 = vmax.f32 %v399, 0.0
        %v526 = vmax.f32 %v402, 0.0
        %v527 = vmax.f32 %v407, 0.0
        %v528 = vmax.f32 %v410, 0.0
        %v529 = vmax.f32 %v415, 0.0
        %v530 = vmax.f32 %v418, 0.0
        %v531 = vmax.f32 %v423, 0.0
        %v532 = vmax.f32 %v426, 0.0
        %v533 = vmax.f32 %v431, 0.0
        %v534 = vmax.f32 %v434, 0.0
        %v535 = vmax.f32 %v439, 0.0
        %v536 = vmax.f32 %v442, 0.0
        %v537 = vmax.f32 %v447, 0.0
        %v538 = vmax.f32 %v450, 0.0
        %v539 = vmax.f32 %v455, 0.0
        %v540 = vmax.f32 %v458, 0.0
        %v541 = vmax.f32 %v463, 0.0
        %v542 = vmax.f32 %v466, 0.0
        %v543 = vmax.f32 %v471, 0.0
        %v544 = vmax.f32 %v474, 0.0
        %v545 = vmax.f32 %v479, 0.0
        %v546 = vmax.f32 %v482, 0.0
        %v547 = vmax.f32 %v487, 0.0
        %v548 = vmax.f32 %v490, 0.0
        %v549 = vmax.f32 %v495, 0.0
        %v550 = vmax.f32 %v498, 0.0
        %v551 = vmax.f32 %v503, 0.0
        %v552 = vmax.f32 %v506, 0.0
        %v553 = vmax.f32 %v511, 0.0
        %v554 = vmax.f32 %v514, 0.0
        %v555 = vmax.f32 %v519, 0.0
        %v556 = vmax.f32 %v522, 0.0
        %v557 = vadd.f32 %v525, %v526
        %v558 = vadd.f32 %v557, %v527
        %v559 = vadd.f32 %v558, %v528
        %v560 = vadd.f32 %v559, %v529
        %v561 = vadd.f32 %v560, %v530
        %v562 = vadd.f32 %v561, %v531
        %v563 = vadd.f32 %v562, %v532
        %v564 = vadd.f32 %v563, %v533
        %v565 = vadd.f32 %v564, %v534
        %v566 = vadd.f32 %v565, %v535
        %v567 = vadd.f32 %v566, %v536
        %v568 = vadd.f32 %v567, %v537
        %v569 = vadd.f32 %v568, %v538
        %v570 = vadd.f32 %v569, %v539
        %v571 = vadd.f32 %v570, %v540
        %v572 = vadd.f32 %v571, %v541
        %v573 = vadd.f32 %v572, %v542
        %v574 = vadd.f32 %v573, %v543
        %v575 = vadd.f32 %v574, %v544
        %v576 = vadd.f32 %v575, %v545
        %v577 = vadd.f32 %v576, %v546
        %v578 = vadd.f32 %v577, %v547
        %v579 = vadd.f32 %v578, %v548
        %v580 = vadd.f32 %v579, %v549
        %v581 = vadd.f32 %v580, %v550
        %v582 = vadd.f32 %v581, %v551
        %v583 = vadd.f32 %v582, %v552
        %v584 = vadd.f32 %v583, %v553
        %v585 = vadd.f32 %v584, %v554
        %v586 = vadd.f32 %v585, %v555
        %v587 = vadd.f32 %v586, %v556
        %v588 = vrot.slane %v587, 4
        %v589 = vadd.f32 %v587, %v588
        %v590 = vrot.slane %v589, 2
        %v591 = vadd.f32 %v589, %v590
        %v592 = vrot.slane %v591, 1
        %v593 = vadd.f32 %v591, %v592
        %v594 = vadd.f32 %v593, 0.0
        %s595 = scalar_lea.vmem %s221, 32
        %v596 = vld [vmem:[%s595] sm:$0xff]
        %v597 = vld [vmem:[%s595 + $0x8] sm:$0xff]
        %v598 = vld [vmem:[%s595 + $0x10] sm:$0x7f]
        %v599 = vld [vmem:[%s595 + $0x18] sm:$0x7f]
        %v600 = vpack.c.bf16 %v598, %v596
        %v601 = vpack.c.bf16 %v599, %v597
        %602 = vxpose.xlu0.c.b16.start [1/8] %v600, 128
        %603 = vxpose.xlu0.c.b16.cont [2/8] 0, 128
        %604 = vxpose.xlu0.c.b16.cont [3/8] 0, 128
        %605 = vxpose.xlu0.c.b16.cont [4/8] 0, 128
        %606 = vxpose.xlu0.c.b16.cont [5/8] 0, 128
        %607 = vxpose.xlu0.c.b16.cont [6/8] 0, 128
        %608 = vxpose.xlu0.c.b16.cont [7/8] 0, 128
        %609 = vxpose.xlu0.c.b16.end [8/8] 0, 128
        %v610 = vpop.trf.xlu0
        %v611 = vpop.trf.xlu0
        %v612 = vpop.trf.xlu0
        %v613 = vpop.trf.xlu0
        %v614 = vpop.trf.xlu0
        %v615 = vpop.trf.xlu0
        %v616 = vpop.trf.xlu0
        %v617 = vpop.trf.xlu0
        %618 = vxpose.xlu0.c.b16.start [1/8] %v601, 128
        %619 = vxpose.xlu0.c.b16.cont [2/8] 0, 128
        %620 = vxpose.xlu0.c.b16.cont [3/8] 0, 128
        %621 = vxpose.xlu0.c.b16.cont [4/8] 0, 128
        %622 = vxpose.xlu0.c.b16.cont [5/8] 0, 128
        %623 = vxpose.xlu0.c.b16.cont [6/8] 0, 128
        %624 = vxpose.xlu0.c.b16.cont [7/8] 0, 128
        %625 = vxpose.xlu0.c.b16.end [8/8] 0, 128
        %v626 = vpop.trf.xlu0
        %v627 = vpop.trf.xlu0
        %v628 = vpop.trf.xlu0
        %v629 = vpop.trf.xlu0
        %v630 = vpop.trf.xlu0
        %v631 = vpop.trf.xlu0
        %v632 = vpop.trf.xlu0
        %v633 = vpop.trf.xlu0
        %v635 = vsel %vm308, %v610, 0
        %v638 = vsel %vm308, %v611, 0
        %v641 = vsel %vm308, %v612, 0
        %v644 = vsel %vm308, %v613, 0
        %v647 = vsel %vm308, %v614, 0
        %v650 = vsel %vm308, %v615, 0
        %v653 = vsel %vm308, %v616, 0
        %v656 = vsel %vm308, %v617, 0
        %v659 = vsel %vm308, %v626, 0
        %v662 = vsel %vm308, %v627, 0
        %v665 = vsel %vm308, %v628, 0
        %v668 = vsel %vm308, %v629, 0
        %v671 = vsel %vm308, %v630, 0
        %v674 = vsel %vm308, %v631, 0
        %v677 = vsel %vm308, %v632, 0
        %v680 = vsel %vm308, %v633, 0
        %682 = vmatprep.subr.bf16.mxu0 0
        %683 = vmatpush1.bf16.msra.mxu0 %v362
        %684 = vmatprep.subr.bf16.mxu0 0
        %685 = vmatpush1.bf16.msra.mxu0 0
        %686 = vmatprep.subr.bf16.mxu0 0
        %687 = vmatpush1.bf16.msra.mxu0 0
        %688 = vmatprep.subr.bf16.mxu0 0
        %689 = vmatpush1.bf16.msra.mxu0 0
        %690 = vmatprep.subr.bf16.mxu0 0
        %691 = vmatpush1.bf16.msra.mxu0 0
        %692 = vmatprep.subr.bf16.mxu0 0
        %693 = vmatpush1.bf16.msra.mxu0 0
        %694 = vmatprep.subr.bf16.mxu0 0
        %695 = vmatpush1.bf16.msra.mxu0 0
        %696 = vmatprep.subr.bf16.mxu0 0
        %697 = vmatpush1.bf16.msra.mxu0 0
        %698 = vmatprep.subr.bf16.mxu0 0
        %699 = vmatpush1.bf16.msra.mxu0 0
        %700 = vmatprep.subr.bf16.mxu0 0
        %701 = vmatpush1.bf16.msra.mxu0 0
        %702 = vmatprep.subr.bf16.mxu0 0
        %703 = vmatpush1.bf16.msra.mxu0 0
        %704 = vmatprep.subr.bf16.mxu0 0
        %705 = vmatpush1.bf16.msra.mxu0 0
        %706 = vmatprep.subr.bf16.mxu0 0
        %707 = vmatpush1.bf16.msra.mxu0 0
        %708 = vmatprep.subr.bf16.mxu0 0
        %709 = vmatpush1.bf16.msra.mxu0 0
        %710 = vmatprep.subr.bf16.mxu0 0
        %711 = vmatpush1.bf16.msra.mxu0 0
        %712 = vmatprep.subr.bf16.mxu0 0
        %713 = vmatpush1.bf16.msra.mxu0 0
        %714 = vmatprep.mubr.bf16.mxu0 0
        %715 = vmatmul.mubr.bf16.gmra.mrb[0].mxu0 %v635
        %v716 = vpop.f32.mrb[0].mxu0
        %v717 = vadd.f32 %v230, %v716
        %v718 = vpop.f32.mrb[0].mxu0
        %v719 = vpop.f32.mrb[0].mxu0
        %v720 = vadd.f32 %v230, %v719
        %v721 = vpop.f32.mrb[0].mxu0
        %722 = vmatprep.mubr.bf16.mxu0 0
        %723 = vmatmul.mubr.bf16.gmra.mrb[0].mxu0 %v638
        %v724 = vpop.f32.mrb[0].mxu0
        %v725 = vadd.f32 %v230, %v724
        %v726 = vpop.f32.mrb[0].mxu0
        %v727 = vpop.f32.mrb[0].mxu0
        %v728 = vadd.f32 %v230, %v727
        %v729 = vpop.f32.mrb[0].mxu0
        %730 = vmatprep.mubr.bf16.mxu0 0
        %731 = vmatmul.mubr.bf16.gmra.mrb[0].mxu0 %v641
        %v732 = vpop.f32.mrb[0].mxu0
        %v733 = vadd.f32 %v230, %v732
        %v734 = vpop.f32.mrb[0].mxu0
        %v735 = vpop.f32.mrb[0].mxu0
        %v736 = vadd.f32 %v230, %v735
        %v737 = vpop.f32.mrb[0].mxu0
        %738 = vmatprep.mubr.bf16.mxu0 0
        %739 = vmatmul.mubr.bf16.gmra.mrb[0].mxu0 %v644
        %v740 = vpop.f32.mrb[0].mxu0
        %v741 = vadd.f32 %v230, %v740
        %v742 = vpop.f32.mrb[0].mxu0
        %v743 = vpop.f32.mrb[0].mxu0
        %v744 = vadd.f32 %v230, %v743
        %v745 = vpop.f32.mrb[0].mxu0
        %746 = vmatprep.mubr.bf16.mxu0 0
        %747 = vmatmul.mubr.bf16.gmra.mrb[0].mxu0 %v647
        %v748 = vpop.f32.mrb[0].mxu0
        %v749 = vadd.f32 %v230, %v748
        %v750 = vpop.f32.mrb[0].mxu0
        %v751 = vpop.f32.mrb[0].mxu0
        %v752 = vadd.f32 %v230, %v751
        %v753 = vpop.f32.mrb[0].mxu0
        %754 = vmatprep.mubr.bf16.mxu0 0
        %755 = vmatmul.mubr.bf16.gmra.mrb[0].mxu0 %v650
        %v756 = vpop.f32.mrb[0].mxu0
        %v757 = vadd.f32 %v230, %v756
        %v758 = vpop.f32.mrb[0].mxu0
        %v759 = vpop.f32.mrb[0].mxu0
        %v760 = vadd.f32 %v230, %v759
        %v761 = vpop.f32.mrb[0].mxu0
        %762 = vmatprep.mubr.bf16.mxu0 0
        %763 = vmatmul.mubr.bf16.gmra.mrb[0].mxu0 %v653
        %v764 = vpop.f32.mrb[0].mxu0
        %v765 = vadd.f32 %v230, %v764
        %v766 = vpop.f32.mrb[0].mxu0
        %v767 = vpop.f32.mrb[0].mxu0
        %v768 = vadd.f32 %v230, %v767
        %v769 = vpop.f32.mrb[0].mxu0
        %770 = vmatprep.mubr.bf16.mxu0 0
        %771 = vmatmul.mubr.bf16.gmra.mrb[0].mxu0 %v656
        %v772 = vpop.f32.mrb[0].mxu0
        %v773 = vadd.f32 %v230, %v772
        %v774 = vpop.f32.mrb[0].mxu0
        %v775 = vpop.f32.mrb[0].mxu0
        %v776 = vadd.f32 %v230, %v775
        %v777 = vpop.f32.mrb[0].mxu0
        %778 = vmatprep.mubr.bf16.mxu0 0
        %779 = vmatmul.mubr.bf16.gmra.mrb[0].mxu0 %v659
        %v780 = vpop.f32.mrb[0].mxu0
        %v781 = vadd.f32 %v230, %v780
        %v782 = vpop.f32.mrb[0].mxu0
        %v783 = vpop.f32.mrb[0].mxu0
        %v784 = vadd.f32 %v230, %v783
        %v785 = vpop.f32.mrb[0].mxu0
        %786 = vmatprep.mubr.bf16.mxu0 0
        %787 = vmatmul.mubr.bf16.gmra.mrb[0].mxu0 %v662
        %v788 = vpop.f32.mrb[0].mxu0
        %v789 = vadd.f32 %v230, %v788
        %v790 = vpop.f32.mrb[0].mxu0
        %v791 = vpop.f32.mrb[0].mxu0
        %v792 = vadd.f32 %v230, %v791
        %v793 = vpop.f32.mrb[0].mxu0
        %794 = vmatprep.mubr.bf16.mxu0 0
        %795 = vmatmul.mubr.bf16.gmra.mrb[0].mxu0 %v665
        %v796 = vpop.f32.mrb[0].mxu0
        %v797 = vadd.f32 %v230, %v796
        %v798 = vpop.f32.mrb[0].mxu0
        %v799 = vpop.f32.mrb[0].mxu0
        %v800 = vadd.f32 %v230, %v799
        %v801 = vpop.f32.mrb[0].mxu0
        %802 = vmatprep.mubr.bf16.mxu0 0
        %803 = vmatmul.mubr.bf16.gmra.mrb[0].mxu0 %v668
        %v804 = vpop.f32.mrb[0].mxu0
        %v805 = vadd.f32 %v230, %v804
        %v806 = vpop.f32.mrb[0].mxu0
        %v807 = vpop.f32.mrb[0].mxu0
        %v808 = vadd.f32 %v230, %v807
        %v809 = vpop.f32.mrb[0].mxu0
        %810 = vmatprep.mubr.bf16.mxu0 0
        %811 = vmatmul.mubr.bf16.gmra.mrb[0].mxu0 %v671
        %v812 = vpop.f32.mrb[0].mxu0
        %v813 = vadd.f32 %v230, %v812
        %v814 = vpop.f32.mrb[0].mxu0
        %v815 = vpop.f32.mrb[0].mxu0
        %v816 = vadd.f32 %v230, %v815
        %v817 = vpop.f32.mrb[0].mxu0
        %818 = vmatprep.mubr.bf16.mxu0 0
        %819 = vmatmul.mubr.bf16.gmra.mrb[0].mxu0 %v674
        %v820 = vpop.f32.mrb[0].mxu0
        %v821 = vadd.f32 %v230, %v820
        %v822 = vpop.f32.mrb[0].mxu0
        %v823 = vpop.f32.mrb[0].mxu0
        %v824 = vadd.f32 %v230, %v823
        %v825 = vpop.f32.mrb[0].mxu0
        %826 = vmatprep.mubr.bf16.mxu0 0
        %827 = vmatmul.mubr.bf16.gmra.mrb[0].mxu0 %v677
        %v828 = vpop.f32.mrb[0].mxu0
        %v829 = vadd.f32 %v230, %v828
        %v830 = vpop.f32.mrb[0].mxu0
        %v831 = vpop.f32.mrb[0].mxu0
        %v832 = vadd.f32 %v230, %v831
        %v833 = vpop.f32.mrb[0].mxu0
        %834 = vmatprep.mubr.bf16.mxu0 0
        %835 = vmatmul.mubr.bf16.gmra.mrb[0].mxu0 %v680
        %v836 = vpop.f32.mrb[0].mxu0
        %v837 = vadd.f32 %v230, %v836
        %v838 = vpop.f32.mrb[0].mxu0
        %v839 = vpop.f32.mrb[0].mxu0
        %v840 = vadd.f32 %v230, %v839
        %v841 = vpop.f32.mrb[0].mxu0
        %842 = vdwg.mxu0
        %v843 = vmax.f32 %v717, 0.0
        %v844 = vmax.f32 %v720, 0.0
        %v845 = vmax.f32 %v725, 0.0
        %v846 = vmax.f32 %v728, 0.0
        %v847 = vmax.f32 %v733, 0.0
        %v848 = vmax.f32 %v736, 0.0
        %v849 = vmax.f32 %v741, 0.0
        %v850 = vmax.f32 %v744, 0.0
        %v851 = vmax.f32 %v749, 0.0
        %v852 = vmax.f32 %v752, 0.0
        %v853 = vmax.f32 %v757, 0.0
        %v854 = vmax.f32 %v760, 0.0
        %v855 = vmax.f32 %v765, 0.0
        %v856 = vmax.f32 %v768, 0.0
        %v857 = vmax.f32 %v773, 0.0
        %v858 = vmax.f32 %v776, 0.0
        %v859 = vmax.f32 %v781, 0.0
        %v860 = vmax.f32 %v784, 0.0
        %v861 = vmax.f32 %v789, 0.0
        %v862 = vmax.f32 %v792, 0.0
        %v863 = vmax.f32 %v797, 0.0
        %v864 = vmax.f32 %v800, 0.0
        %v865 = vmax.f32 %v805, 0.0
        %v866 = vmax.f32 %v808, 0.0
        %v867 = vmax.f32 %v813, 0.0
        %v868 = vmax.f32 %v816, 0.0
        %v869 = vmax.f32 %v821, 0.0
        %v870 = vmax.f32 %v824, 0.0
        %v871 = vmax.f32 %v829, 0.0
        %v872 = vmax.f32 %v832, 0.0
        %v873 = vmax.f32 %v837, 0.0
        %v874 = vmax.f32 %v840, 0.0
        %v875 = vadd.f32 %v843, %v844
        %v876 = vadd.f32 %v875, %v845
        %v877 = vadd.f32 %v876, %v846
        %v878 = vadd.f32 %v877, %v847
        %v879 = vadd.f32 %v878, %v848
        %v880 = vadd.f32 %v879, %v849
        %v881 = vadd.f32 %v880, %v850
        %v882 = vadd.f32 %v881, %v851
        %v883 = vadd.f32 %v882, %v852
        %v884 = vadd.f32 %v883, %v853
        %v885 = vadd.f32 %v884, %v854
        %v886 = vadd.f32 %v885, %v855
        %v887 = vadd.f32 %v886, %v856
        %v888 = vadd.f32 %v887, %v857
        %v889 = vadd.f32 %v888, %v858
        %v890 = vadd.f32 %v889, %v859
        %v891 = vadd.f32 %v890, %v860
        %v892 = vadd.f32 %v891, %v861
        %v893 = vadd.f32 %v892, %v862
        %v894 = vadd.f32 %v893, %v863
        %v895 = vadd.f32 %v894, %v864
        %v896 = vadd.f32 %v895, %v865
        %v897 = vadd.f32 %v896, %v866
        %v898 = vadd.f32 %v897, %v867
        %v899 = vadd.f32 %v898, %v868
        %v900 = vadd.f32 %v899, %v869
        %v901 = vadd.f32 %v900, %v870
        %v902 = vadd.f32 %v901, %v871
        %v903 = vadd.f32 %v902, %v872
        %v904 = vadd.f32 %v903, %v873
        %v905 = vadd.f32 %v904, %v874
        %v906 = vrot.slane %v905, 4
        %v907 = vadd.f32 %v905, %v906
        %v908 = vrot.slane %v907, 2
        %v909 = vadd.f32 %v907, %v908
        %v910 = vrot.slane %v909, 1
        %v911 = vadd.f32 %v909, %v910
        %v912 = vadd.f32 %v594, %v911
        %s913 = scalar_lea.vmem %s221, 64
        %v914 = vld [vmem:[%s913] sm:$0xff]
        %v915 = vld [vmem:[%s913 + $0x8] sm:$0xff]
        %v916 = vld [vmem:[%s913 + $0x10] sm:$0x7f]
        %v917 = vld [vmem:[%s913 + $0x18] sm:$0x7f]
        %v918 = vpack.c.bf16 %v916, %v914
        %v919 = vpack.c.bf16 %v917, %v915
        %920 = vxpose.xlu0.c.b16.start [1/8] %v918, 128
        %921 = vxpose.xlu0.c.b16.cont [2/8] 0, 128
        %922 = vxpose.xlu0.c.b16.cont [3/8] 0, 128
        %923 = vxpose.xlu0.c.b16.cont [4/8] 0, 128
        %924 = vxpose.xlu0.c.b16.cont [5/8] 0, 128
        %925 = vxpose.xlu0.c.b16.cont [6/8] 0, 128
        %926 = vxpose.xlu0.c.b16.cont [7/8] 0, 128
        %927 = vxpose.xlu0.c.b16.end [8/8] 0, 128
        %v928 = vpop.trf.xlu0
        %v929 = vpop.trf.xlu0
        %v930 = vpop.trf.xlu0
        %v931 = vpop.trf.xlu0
        %v932 = vpop.trf.xlu0
        %v933 = vpop.trf.xlu0
        %v934 = vpop.trf.xlu0
        %v935 = vpop.trf.xlu0
        %936 = vxpose.xlu0.c.b16.start [1/8] %v919, 128
        %937 = vxpose.xlu0.c.b16.cont [2/8] 0, 128
        %938 = vxpose.xlu0.c.b16.cont [3/8] 0, 128
        %939 = vxpose.xlu0.c.b16.cont [4/8] 0, 128
        %940 = vxpose.xlu0.c.b16.cont [5/8] 0, 128
        %941 = vxpose.xlu0.c.b16.cont [6/8] 0, 128
        %942 = vxpose.xlu0.c.b16.cont [7/8] 0, 128
        %943 = vxpose.xlu0.c.b16.end [8/8] 0, 128
        %v944 = vpop.trf.xlu0
        %v945 = vpop.trf.xlu0
        %v946 = vpop.trf.xlu0
        %v947 = vpop.trf.xlu0
        %v948 = vpop.trf.xlu0
        %v949 = vpop.trf.xlu0
        %v950 = vpop.trf.xlu0
        %v951 = vpop.trf.xlu0
        %v953 = vsel %vm308, %v928, 0
        %v956 = vsel %vm308, %v929, 0
        %v959 = vsel %vm308, %v930, 0
        %v962 = vsel %vm308, %v931, 0
        %v965 = vsel %vm308, %v932, 0
        %v968 = vsel %vm308, %v933, 0
        %v971 = vsel %vm308, %v934, 0
        %v974 = vsel %vm308, %v935, 0
        %v977 = vsel %vm308, %v944, 0
        %v980 = vsel %vm308, %v945, 0
        %v983 = vsel %vm308, %v946, 0
        %v986 = vsel %vm308, %v947, 0
        %v989 = vsel %vm308, %v948, 0
        %v992 = vsel %vm308, %v949, 0
        %v995 = vsel %vm308, %v950, 0
        %v998 = vsel %vm308, %v951, 0
        %1000 = vmatprep.subr.bf16.mxu0 0
        %1001 = vmatpush1.bf16.msra.mxu0 %v362
        %1002 = vmatprep.subr.bf16.mxu0 0
        %1003 = vmatpush1.bf16.msra.mxu0 0
        %1004 = vmatprep.subr.bf16.mxu0 0
        %1005 = vmatpush1.bf16.msra.mxu0 0
        %1006 = vmatprep.subr.bf16.mxu0 0
        %1007 = vmatpush1.bf16.msra.mxu0 0
        %1008 = vmatprep.subr.bf16.mxu0 0
        %1009 = vmatpush1.bf16.msra.mxu0 0
        %1010 = vmatprep.subr.bf16.mxu0 0
        %1011 = vmatpush1.bf16.msra.mxu0 0
        %1012 = vmatprep.subr.bf16.mxu0 0
        %1013 = vmatpush1.bf16.msra.mxu0 0
        %1014 = vmatprep.subr.bf16.mxu0 0
        %1015 = vmatpush1.bf16.msra.mxu0 0
        %1016 = vmatprep.subr.bf16.mxu0 0
        %1017 = vmatpush1.bf16.msra.mxu0 0
        %1018 = vmatprep.subr.bf16.mxu0 0
        %1019 = vmatpush1.bf16.msra.mxu0 0
        %1020 = vmatprep.subr.bf16.mxu0 0
        %1021 = vmatpush1.bf16.msra.mxu0 0
        %1022 = vmatprep.subr.bf16.mxu0 0
        %1023 = vmatpush1.bf16.msra.mxu0 0
        %1024 = vmatprep.subr.bf16.mxu0 0
        %1025 = vmatpush1.bf16.msra.mxu0 0
        %1026 = vmatprep.subr.bf16.mxu0 0
        %1027 = vmatpush1.bf16.msra.mxu0 0
        %1028 = vmatprep.subr.bf16.mxu0 0
        %1029 = vmatpush1.bf16.msra.mxu0 0
        %1030 = vmatprep.subr.bf16.mxu0 0
        %1031 = vmatpush1.bf16.msra.mxu0 0
        %1032 = vmatprep.mubr.bf16.mxu0 0
        %1033 = vmatmul.mubr.bf16.gmra.mrb[0].mxu0 %v953
        %v1034 = vpop.f32.mrb[0].mxu0
        %v1035 = vadd.f32 %v230, %v1034
        %v1036 = vpop.f32.mrb[0].mxu0
        %v1037 = vpop.f32.mrb[0].mxu0
        %v1038 = vadd.f32 %v230, %v1037
        %v1039 = vpop.f32.mrb[0].mxu0
        %1040 = vmatprep.mubr.bf16.mxu0 0
        %1041 = vmatmul.mubr.bf16.gmra.mrb[0].mxu0 %v956
        %v1042 = vpop.f32.mrb[0].mxu0
        %v1043 = vadd.f32 %v230, %v1042
        %v1044 = vpop.f32.mrb[0].mxu0
        %v1045 = vpop.f32.mrb[0].mxu0
        %v1046 = vadd.f32 %v230, %v1045
        %v1047 = vpop.f32.mrb[0].mxu0
        %1048 = vmatprep.mubr.bf16.mxu0 0
        %1049 = vmatmul.mubr.bf16.gmra.mrb[0].mxu0 %v959
        %v1050 = vpop.f32.mrb[0].mxu0
        %v1051 = vadd.f32 %v230, %v1050
        %v1052 = vpop.f32.mrb[0].mxu0
        %v1053 = vpop.f32.mrb[0].mxu0
        %v1054 = vadd.f32 %v230, %v1053
        %v1055 = vpop.f32.mrb[0].mxu0
        %1056 = vmatprep.mubr.bf16.mxu0 0
        %1057 = vmatmul.mubr.bf16.gmra.mrb[0].mxu0 %v962
        %v1058 = vpop.f32.mrb[0].mxu0
        %v1059 = vadd.f32 %v230, %v1058
        %v1060 = vpop.f32.mrb[0].mxu0
        %v1061 = vpop.f32.mrb[0].mxu0
        %v1062 = vadd.f32 %v230, %v1061
        %v1063 = vpop.f32.mrb[0].mxu0
        %1064 = vmatprep.mubr.bf16.mxu0 0
        %1065 = vmatmul.mubr.bf16.gmra.mrb[0].mxu0 %v965
        %v1066 = vpop.f32.mrb[0].mxu0
        %v1067 = vadd.f32 %v230, %v1066
        %v1068 = vpop.f32.mrb[0].mxu0
        %v1069 = vpop.f32.mrb[0].mxu0
        %v1070 = vadd.f32 %v230, %v1069
        %v1071 = vpop.f32.mrb[0].mxu0
        %1072 = vmatprep.mubr.bf16.mxu0 0
        %1073 = vmatmul.mubr.bf16.gmra.mrb[0].mxu0 %v968
        %v1074 = vpop.f32.mrb[0].mxu0
        %v1075 = vadd.f32 %v230, %v1074
        %v1076 = vpop.f32.mrb[0].mxu0
        %v1077 = vpop.f32.mrb[0].mxu0
        %v1078 = vadd.f32 %v230, %v1077
        %v1079 = vpop.f32.mrb[0].mxu0
        %1080 = vmatprep.mubr.bf16.mxu0 0
        %1081 = vmatmul.mubr.bf16.gmra.mrb[0].mxu0 %v971
        %v1082 = vpop.f32.mrb[0].mxu0
        %v1083 = vadd.f32 %v230, %v1082
        %v1084 = vpop.f32.mrb[0].mxu0
        %v1085 = vpop.f32.mrb[0].mxu0
        %v1086 = vadd.f32 %v230, %v1085
        %v1087 = vpop.f32.mrb[0].mxu0
        %1088 = vmatprep.mubr.bf16.mxu0 0
        %1089 = vmatmul.mubr.bf16.gmra.mrb[0].mxu0 %v974
        %v1090 = vpop.f32.mrb[0].mxu0
        %v1091 = vadd.f32 %v230, %v1090
        %v1092 = vpop.f32.mrb[0].mxu0
        %v1093 = vpop.f32.mrb[0].mxu0
        %v1094 = vadd.f32 %v230, %v1093
        %v1095 = vpop.f32.mrb[0].mxu0
        %1096 = vmatprep.mubr.bf16.mxu0 0
        %1097 = vmatmul.mubr.bf16.gmra.mrb[0].mxu0 %v977
        %v1098 = vpop.f32.mrb[0].mxu0
        %v1099 = vadd.f32 %v230, %v1098
        %v1100 = vpop.f32.mrb[0].mxu0
        %v1101 = vpop.f32.mrb[0].mxu0
        %v1102 = vadd.f32 %v230, %v1101
        %v1103 = vpop.f32.mrb[0].mxu0
        %1104 = vmatprep.mubr.bf16.mxu0 0
        %1105 = vmatmul.mubr.bf16.gmra.mrb[0].mxu0 %v980
        %v1106 = vpop.f32.mrb[0].mxu0
        %v1107 = vadd.f32 %v230, %v1106
        %v1108 = vpop.f32.mrb[0].mxu0
        %v1109 = vpop.f32.mrb[0].mxu0
        %v1110 = vadd.f32 %v230, %v1109
        %v1111 = vpop.f32.mrb[0].mxu0
        %1112 = vmatprep.mubr.bf16.mxu0 0
        %1113 = vmatmul.mubr.bf16.gmra.mrb[0].mxu0 %v983
        %v1114 = vpop.f32.mrb[0].mxu0
        %v1115 = vadd.f32 %v230, %v1114
        %v1116 = vpop.f32.mrb[0].mxu0
        %v1117 = vpop.f32.mrb[0].mxu0
        %v1118 = vadd.f32 %v230, %v1117
        %v1119 = vpop.f32.mrb[0].mxu0
        %1120 = vmatprep.mubr.bf16.mxu0 0
        %1121 = vmatmul.mubr.bf16.gmra.mrb[0].mxu0 %v986
        %v1122 = vpop.f32.mrb[0].mxu0
        %v1123 = vadd.f32 %v230, %v1122
        %v1124 = vpop.f32.mrb[0].mxu0
        %v1125 = vpop.f32.mrb[0].mxu0
        %v1126 = vadd.f32 %v230, %v1125
        %v1127 = vpop.f32.mrb[0].mxu0
        %1128 = vmatprep.mubr.bf16.mxu0 0
        %1129 = vmatmul.mubr.bf16.gmra.mrb[0].mxu0 %v989
        %v1130 = vpop.f32.mrb[0].mxu0
        %v1131 = vadd.f32 %v230, %v1130
        %v1132 = vpop.f32.mrb[0].mxu0
        %v1133 = vpop.f32.mrb[0].mxu0
        %v1134 = vadd.f32 %v230, %v1133
        %v1135 = vpop.f32.mrb[0].mxu0
        %1136 = vmatprep.mubr.bf16.mxu0 0
        %1137 = vmatmul.mubr.bf16.gmra.mrb[0].mxu0 %v992
        %v1138 = vpop.f32.mrb[0].mxu0
        %v1139 = vadd.f32 %v230, %v1138
        %v1140 = vpop.f32.mrb[0].mxu0
        %v1141 = vpop.f32.mrb[0].mxu0
        %v1142 = vadd.f32 %v230, %v1141
        %v1143 = vpop.f32.mrb[0].mxu0
        %1144 = vmatprep.mubr.bf16.mxu0 0
        %1145 = vmatmul.mubr.bf16.gmra.mrb[0].mxu0 %v995
        %v1146 = vpop.f32.mrb[0].mxu0
        %v1147 = vadd.f32 %v230, %v1146
        %v1148 = vpop.f32.mrb[0].mxu0
        %v1149 = vpop.f32.mrb[0].mxu0
        %v1150 = vadd.f32 %v230, %v1149
        %v1151 = vpop.f32.mrb[0].mxu0
        %1152 = vmatprep.mubr.bf16.mxu0 0
        %1153 = vmatmul.mubr.bf16.gmra.mrb[0].mxu0 %v998
        %v1154 = vpop.f32.mrb[0].mxu0
        %v1155 = vadd.f32 %v230, %v1154
        %v1156 = vpop.f32.mrb[0].mxu0
        %v1157 = vpop.f32.mrb[0].mxu0
        %v1158 = vadd.f32 %v230, %v1157
        %v1159 = vpop.f32.mrb[0].mxu0
        %1160 = vdwg.mxu0
        %v1161 = vmax.f32 %v1035, 0.0
        %v1162 = vmax.f32 %v1038, 0.0
        %v1163 = vmax.f32 %v1043, 0.0
        %v1164 = vmax.f32 %v1046, 0.0
        %v1165 = vmax.f32 %v1051, 0.0
        %v1166 = vmax.f32 %v1054, 0.0
        %v1167 = vmax.f32 %v1059, 0.0
        %v1168 = vmax.f32 %v1062, 0.0
        %v1169 = vmax.f32 %v1067, 0.0
        %v1170 = vmax.f32 %v1070, 0.0
        %v1171 = vmax.f32 %v1075, 0.0
        %v1172 = vmax.f32 %v1078, 0.0
        %v1173 = vmax.f32 %v1083, 0.0
        %v1174 = vmax.f32 %v1086, 0.0
        %v1175 = vmax.f32 %v1091, 0.0
        %v1176 = vmax.f32 %v1094, 0.0
        %v1177 = vmax.f32 %v1099, 0.0
        %v1178 = vmax.f32 %v1102, 0.0
        %v1179 = vmax.f32 %v1107, 0.0
        %v1180 = vmax.f32 %v1110, 0.0
        %v1181 = vmax.f32 %v1115, 0.0
        %v1182 = vmax.f32 %v1118, 0.0
        %v1183 = vmax.f32 %v1123, 0.0
        %v1184 = vmax.f32 %v1126, 0.0
        %v1185 = vmax.f32 %v1131, 0.0
        %v1186 = vmax.f32 %v1134, 0.0
        %v1187 = vmax.f32 %v1139, 0.0
        %v1188 = vmax.f32 %v1142, 0.0
        %v1189 = vmax.f32 %v1147, 0.0
        %v1190 = vmax.f32 %v1150, 0.0
        %v1191 = vmax.f32 %v1155, 0.0
        %v1192 = vmax.f32 %v1158, 0.0
        %v1193 = vadd.f32 %v1161, %v1162
        %v1194 = vadd.f32 %v1193, %v1163
        %v1195 = vadd.f32 %v1194, %v1164
        %v1196 = vadd.f32 %v1195, %v1165
        %v1197 = vadd.f32 %v1196, %v1166
        %v1198 = vadd.f32 %v1197, %v1167
        %v1199 = vadd.f32 %v1198, %v1168
        %v1200 = vadd.f32 %v1199, %v1169
        %v1201 = vadd.f32 %v1200, %v1170
        %v1202 = vadd.f32 %v1201, %v1171
        %v1203 = vadd.f32 %v1202, %v1172
        %v1204 = vadd.f32 %v1203, %v1173
        %v1205 = vadd.f32 %v1204, %v1174
        %v1206 = vadd.f32 %v1205, %v1175
        %v1207 = vadd.f32 %v1206, %v1176
        %v1208 = vadd.f32 %v1207, %v1177
        %v1209 = vadd.f32 %v1208, %v1178
        %v1210 = vadd.f32 %v1209, %v1179
        %v1211 = vadd.f32 %v1210, %v1180
        %v1212 = vadd.f32 %v1211, %v1181
        %v1213 = vadd.f32 %v1212, %v1182
        %v1214 = vadd.f32 %v1213, %v1183
        %v1215 = vadd.f32 %v1214, %v1184
        %v1216 = vadd.f32 %v1215, %v1185
        %v1217 = vadd.f32 %v1216, %v1186
        %v1218 = vadd.f32 %v1217, %v1187
        %v1219 = vadd.f32 %v1218, %v1188
        %v1220 = vadd.f32 %v1219, %v1189
        %v1221 = vadd.f32 %v1220, %v1190
        %v1222 = vadd.f32 %v1221, %v1191
        %v1223 = vadd.f32 %v1222, %v1192
        %v1224 = vrot.slane %v1223, 4
        %v1225 = vadd.f32 %v1223, %v1224
        %v1226 = vrot.slane %v1225, 2
        %v1227 = vadd.f32 %v1225, %v1226
        %v1228 = vrot.slane %v1227, 1
        %v1229 = vadd.f32 %v1227, %v1228
        %v1230 = vadd.f32 %v912, %v1229
        %s1231 = scalar_lea.vmem %s221, 96
        %v1232 = vld [vmem:[%s1231] sm:$0xff]
        %v1233 = vld [vmem:[%s1231 + $0x8] sm:$0xff]
        %v1234 = vld [vmem:[%s1231 + $0x10] sm:$0x7f]
        %v1235 = vld [vmem:[%s1231 + $0x18] sm:$0x7f]
        %v1236 = vpack.c.bf16 %v1234, %v1232
        %v1237 = vpack.c.bf16 %v1235, %v1233
        %1238 = vxpose.xlu0.c.b16.start [1/8] %v1236, 128
        %1239 = vxpose.xlu0.c.b16.cont [2/8] 0, 128
        %1240 = vxpose.xlu0.c.b16.cont [3/8] 0, 128
        %1241 = vxpose.xlu0.c.b16.cont [4/8] 0, 128
        %1242 = vxpose.xlu0.c.b16.cont [5/8] 0, 128
        %1243 = vxpose.xlu0.c.b16.cont [6/8] 0, 128
        %1244 = vxpose.xlu0.c.b16.cont [7/8] 0, 128
        %1245 = vxpose.xlu0.c.b16.end [8/8] 0, 128
        %v1246 = vpop.trf.xlu0
        %v1247 = vpop.trf.xlu0
        %v1248 = vpop.trf.xlu0
        %v1249 = vpop.trf.xlu0
        %v1250 = vpop.trf.xlu0
        %v1251 = vpop.trf.xlu0
        %v1252 = vpop.trf.xlu0
        %v1253 = vpop.trf.xlu0
        %1254 = vxpose.xlu0.c.b16.start [1/8] %v1237, 128
        %1255 = vxpose.xlu0.c.b16.cont [2/8] 0, 128
        %1256 = vxpose.xlu0.c.b16.cont [3/8] 0, 128
        %1257 = vxpose.xlu0.c.b16.cont [4/8] 0, 128
        %1258 = vxpose.xlu0.c.b16.cont [5/8] 0, 128
        %1259 = vxpose.xlu0.c.b16.cont [6/8] 0, 128
        %1260 = vxpose.xlu0.c.b16.cont [7/8] 0, 128
        %1261 = vxpose.xlu0.c.b16.end [8/8] 0, 128
        %v1262 = vpop.trf.xlu0
        %v1263 = vpop.trf.xlu0
        %v1264 = vpop.trf.xlu0
        %v1265 = vpop.trf.xlu0
        %v1266 = vpop.trf.xlu0
        %v1267 = vpop.trf.xlu0
        %v1268 = vpop.trf.xlu0
        %v1269 = vpop.trf.xlu0
        %v1271 = vsel %vm308, %v1246, 0
        %v1274 = vsel %vm308, %v1247, 0
        %v1277 = vsel %vm308, %v1248, 0
        %v1280 = vsel %vm308, %v1249, 0
        %v1283 = vsel %vm308, %v1250, 0
        %v1286 = vsel %vm308, %v1251, 0
        %v1289 = vsel %vm308, %v1252, 0
        %v1292 = vsel %vm308, %v1253, 0
        %v1295 = vsel %vm308, %v1262, 0
        %v1298 = vsel %vm308, %v1263, 0
        %v1301 = vsel %vm308, %v1264, 0
        %v1304 = vsel %vm308, %v1265, 0
        %v1307 = vsel %vm308, %v1266, 0
        %v1310 = vsel %vm308, %v1267, 0
        %v1313 = vsel %vm308, %v1268, 0
        %v1316 = vsel %vm308, %v1269, 0
        %1318 = vmatprep.subr.bf16.mxu0 0
        %1319 = vmatpush1.bf16.msra.mxu0 %v362
        %1320 = vmatprep.subr.bf16.mxu0 0
        %1321 = vmatpush1.bf16.msra.mxu0 0
        %1322 = vmatprep.subr.bf16.mxu0 0
        %1323 = vmatpush1.bf16.msra.mxu0 0
        %1324 = vmatprep.subr.bf16.mxu0 0
        %1325 = vmatpush1.bf16.msra.mxu0 0
        %1326 = vmatprep.subr.bf16.mxu0 0
        %1327 = vmatpush1.bf16.msra.mxu0 0
        %1328 = vmatprep.subr.bf16.mxu0 0
        %1329 = vmatpush1.bf16.msra.mxu0 0
        %1330 = vmatprep.subr.bf16.mxu0 0
        %1331 = vmatpush1.bf16.msra.mxu0 0
        %1332 = vmatprep.subr.bf16.mxu0 0
        %1333 = vmatpush1.bf16.msra.mxu0 0
        %1334 = vmatprep.subr.bf16.mxu0 0
        %1335 = vmatpush1.bf16.msra.mxu0 0
        %1336 = vmatprep.subr.bf16.mxu0 0
        %1337 = vmatpush1.bf16.msra.mxu0 0
        %1338 = vmatprep.subr.bf16.mxu0 0
        %1339 = vmatpush1.bf16.msra.mxu0 0
        %1340 = vmatprep.subr.bf16.mxu0 0
        %1341 = vmatpush1.bf16.msra.mxu0 0
        %1342 = vmatprep.subr.bf16.mxu0 0
        %1343 = vmatpush1.bf16.msra.mxu0 0
        %1344 = vmatprep.subr.bf16.mxu0 0
        %1345 = vmatpush1.bf16.msra.mxu0 0
        %1346 = vmatprep.subr.bf16.mxu0 0
        %1347 = vmatpush1.bf16.msra.mxu0 0
        %1348 = vmatprep.subr.bf16.mxu0 0
        %1349 = vmatpush1.bf16.msra.mxu0 0
        %1350 = vmatprep.mubr.bf16.mxu0 0
        %1351 = vmatmul.mubr.bf16.gmra.mrb[0].mxu0 %v1271
        %v1352 = vpop.f32.mrb[0].mxu0
        %v1353 = vadd.f32 %v230, %v1352
        %v1354 = vpop.f32.mrb[0].mxu0
        %v1355 = vpop.f32.mrb[0].mxu0
        %v1356 = vadd.f32 %v230, %v1355
        %v1357 = vpop.f32.mrb[0].mxu0
        %1358 = vmatprep.mubr.bf16.mxu0 0
        %1359 = vmatmul.mubr.bf16.gmra.mrb[0].mxu0 %v1274
        %v1360 = vpop.f32.mrb[0].mxu0
        %v1361 = vadd.f32 %v230, %v1360
        %v1362 = vpop.f32.mrb[0].mxu0
        %v1363 = vpop.f32.mrb[0].mxu0
        %v1364 = vadd.f32 %v230, %v1363
        %v1365 = vpop.f32.mrb[0].mxu0
        %1366 = vmatprep.mubr.bf16.mxu0 0
        %1367 = vmatmul.mubr.bf16.gmra.mrb[0].mxu0 %v1277
        %v1368 = vpop.f32.mrb[0].mxu0
        %v1369 = vadd.f32 %v230, %v1368
        %v1370 = vpop.f32.mrb[0].mxu0
        %v1371 = vpop.f32.mrb[0].mxu0
        %v1372 = vadd.f32 %v230, %v1371
        %v1373 = vpop.f32.mrb[0].mxu0
        %1374 = vmatprep.mubr.bf16.mxu0 0
        %1375 = vmatmul.mubr.bf16.gmra.mrb[0].mxu0 %v1280
        %v1376 = vpop.f32.mrb[0].mxu0
        %v1377 = vadd.f32 %v230, %v1376
        %v1378 = vpop.f32.mrb[0].mxu0
        %v1379 = vpop.f32.mrb[0].mxu0
        %v1380 = vadd.f32 %v230, %v1379
        %v1381 = vpop.f32.mrb[0].mxu0
        %1382 = vmatprep.mubr.bf16.mxu0 0
        %1383 = vmatmul.mubr.bf16.gmra.mrb[0].mxu0 %v1283
        %v1384 = vpop.f32.mrb[0].mxu0
        %v1385 = vadd.f32 %v230, %v1384
        %v1386 = vpop.f32.mrb[0].mxu0
        %v1387 = vpop.f32.mrb[0].mxu0
        %v1388 = vadd.f32 %v230, %v1387
        %v1389 = vpop.f32.mrb[0].mxu0
        %1390 = vmatprep.mubr.bf16.mxu0 0
        %1391 = vmatmul.mubr.bf16.gmra.mrb[0].mxu0 %v1286
        %v1392 = vpop.f32.mrb[0].mxu0
        %v1393 = vadd.f32 %v230, %v1392
        %v1394 = vpop.f32.mrb[0].mxu0
        %v1395 = vpop.f32.mrb[0].mxu0
        %v1396 = vadd.f32 %v230, %v1395
        %v1397 = vpop.f32.mrb[0].mxu0
        %1398 = vmatprep.mubr.bf16.mxu0 0
        %1399 = vmatmul.mubr.bf16.gmra.mrb[0].mxu0 %v1289
        %v1400 = vpop.f32.mrb[0].mxu0
        %v1401 = vadd.f32 %v230, %v1400
        %v1402 = vpop.f32.mrb[0].mxu0
        %v1403 = vpop.f32.mrb[0].mxu0
        %v1404 = vadd.f32 %v230, %v1403
        %v1405 = vpop.f32.mrb[0].mxu0
        %1406 = vmatprep.mubr.bf16.mxu0 0
        %1407 = vmatmul.mubr.bf16.gmra.mrb[0].mxu0 %v1292
        %v1408 = vpop.f32.mrb[0].mxu0
        %v1409 = vadd.f32 %v230, %v1408
        %v1410 = vpop.f32.mrb[0].mxu0
        %v1411 = vpop.f32.mrb[0].mxu0
        %v1412 = vadd.f32 %v230, %v1411
        %v1413 = vpop.f32.mrb[0].mxu0
        %1414 = vmatprep.mubr.bf16.mxu0 0
        %1415 = vmatmul.mubr.bf16.gmra.mrb[0].mxu0 %v1295
        %v1416 = vpop.f32.mrb[0].mxu0
        %v1417 = vadd.f32 %v230, %v1416
        %v1418 = vpop.f32.mrb[0].mxu0
        %v1419 = vpop.f32.mrb[0].mxu0
        %v1420 = vadd.f32 %v230, %v1419
        %v1421 = vpop.f32.mrb[0].mxu0
        %1422 = vmatprep.mubr.bf16.mxu0 0
        %1423 = vmatmul.mubr.bf16.gmra.mrb[0].mxu0 %v1298
        %v1424 = vpop.f32.mrb[0].mxu0
        %v1425 = vadd.f32 %v230, %v1424
        %v1426 = vpop.f32.mrb[0].mxu0
        %v1427 = vpop.f32.mrb[0].mxu0
        %v1428 = vadd.f32 %v230, %v1427
        %v1429 = vpop.f32.mrb[0].mxu0
        %1430 = vmatprep.mubr.bf16.mxu0 0
        %1431 = vmatmul.mubr.bf16.gmra.mrb[0].mxu0 %v1301
        %v1432 = vpop.f32.mrb[0].mxu0
        %v1433 = vadd.f32 %v230, %v1432
        %v1434 = vpop.f32.mrb[0].mxu0
        %v1435 = vpop.f32.mrb[0].mxu0
        %v1436 = vadd.f32 %v230, %v1435
        %v1437 = vpop.f32.mrb[0].mxu0
        %1438 = vmatprep.mubr.bf16.mxu0 0
        %1439 = vmatmul.mubr.bf16.gmra.mrb[0].mxu0 %v1304
        %v1440 = vpop.f32.mrb[0].mxu0
        %v1441 = vadd.f32 %v230, %v1440
        %v1442 = vpop.f32.mrb[0].mxu0
        %v1443 = vpop.f32.mrb[0].mxu0
        %v1444 = vadd.f32 %v230, %v1443
        %v1445 = vpop.f32.mrb[0].mxu0
        %1446 = vmatprep.mubr.bf16.mxu0 0
        %1447 = vmatmul.mubr.bf16.gmra.mrb[0].mxu0 %v1307
        %v1448 = vpop.f32.mrb[0].mxu0
        %v1449 = vadd.f32 %v230, %v1448
        %v1450 = vpop.f32.mrb[0].mxu0
        %v1451 = vpop.f32.mrb[0].mxu0
        %v1452 = vadd.f32 %v230, %v1451
        %v1453 = vpop.f32.mrb[0].mxu0
        %1454 = vmatprep.mubr.bf16.mxu0 0
        %1455 = vmatmul.mubr.bf16.gmra.mrb[0].mxu0 %v1310
        %v1456 = vpop.f32.mrb[0].mxu0
        %v1457 = vadd.f32 %v230, %v1456
        %v1458 = vpop.f32.mrb[0].mxu0
        %v1459 = vpop.f32.mrb[0].mxu0
        %v1460 = vadd.f32 %v230, %v1459
        %v1461 = vpop.f32.mrb[0].mxu0
        %1462 = vmatprep.mubr.bf16.mxu0 0
        %1463 = vmatmul.mubr.bf16.gmra.mrb[0].mxu0 %v1313
        %v1464 = vpop.f32.mrb[0].mxu0
        %v1465 = vadd.f32 %v230, %v1464
        %v1466 = vpop.f32.mrb[0].mxu0
        %v1467 = vpop.f32.mrb[0].mxu0
        %v1468 = vadd.f32 %v230, %v1467
        %v1469 = vpop.f32.mrb[0].mxu0
        %1470 = vmatprep.mubr.bf16.mxu0 0
        %1471 = vmatmul.mubr.bf16.gmra.mrb[0].mxu0 %v1316
        %v1472 = vpop.f32.mrb[0].mxu0
        %v1473 = vadd.f32 %v230, %v1472
        %v1474 = vpop.f32.mrb[0].mxu0
        %v1475 = vpop.f32.mrb[0].mxu0
        %v1476 = vadd.f32 %v230, %v1475
        %v1477 = vpop.f32.mrb[0].mxu0
        %1478 = vdwg.mxu0
        %v1479 = vmax.f32 %v1353, 0.0
        %v1480 = vmax.f32 %v1356, 0.0
        %v1481 = vmax.f32 %v1361, 0.0
        %v1482 = vmax.f32 %v1364, 0.0
        %v1483 = vmax.f32 %v1369, 0.0
        %v1484 = vmax.f32 %v1372, 0.0
        %v1485 = vmax.f32 %v1377, 0.0
        %v1486 = vmax.f32 %v1380, 0.0
        %v1487 = vmax.f32 %v1385, 0.0
        %v1488 = vmax.f32 %v1388, 0.0
        %v1489 = vmax.f32 %v1393, 0.0
        %v1490 = vmax.f32 %v1396, 0.0
        %v1491 = vmax.f32 %v1401, 0.0
        %v1492 = vmax.f32 %v1404, 0.0
        %v1493 = vmax.f32 %v1409, 0.0
        %v1494 = vmax.f32 %v1412, 0.0
        %v1495 = vmax.f32 %v1417, 0.0
        %v1496 = vmax.f32 %v1420, 0.0
        %v1497 = vmax.f32 %v1425, 0.0
        %v1498 = vmax.f32 %v1428, 0.0
        %v1499 = vmax.f32 %v1433, 0.0
        %v1500 = vmax.f32 %v1436, 0.0
        %v1501 = vmax.f32 %v1441, 0.0
        %v1502 = vmax.f32 %v1444, 0.0
        %v1503 = vmax.f32 %v1449, 0.0
        %v1504 = vmax.f32 %v1452, 0.0
        %v1505 = vmax.f32 %v1457, 0.0
        %v1506 = vmax.f32 %v1460, 0.0
        %v1507 = vmax.f32 %v1465, 0.0
        %v1508 = vmax.f32 %v1468, 0.0
        %v1509 = vmax.f32 %v1473, 0.0
        %v1510 = vmax.f32 %v1476, 0.0
        %v1511 = vadd.f32 %v1479, %v1480
        %v1512 = vadd.f32 %v1511, %v1481
        %v1513 = vadd.f32 %v1512, %v1482
        %v1514 = vadd.f32 %v1513, %v1483
        %v1515 = vadd.f32 %v1514, %v1484
        %v1516 = vadd.f32 %v1515, %v1485
        %v1517 = vadd.f32 %v1516, %v1486
        %v1518 = vadd.f32 %v1517, %v1487
        %v1519 = vadd.f32 %v1518, %v1488
        %v1520 = vadd.f32 %v1519, %v1489
        %v1521 = vadd.f32 %v1520, %v1490
        %v1522 = vadd.f32 %v1521, %v1491
        %v1523 = vadd.f32 %v1522, %v1492
        %v1524 = vadd.f32 %v1523, %v1493
        %v1525 = vadd.f32 %v1524, %v1494
        %v1526 = vadd.f32 %v1525, %v1495
        %v1527 = vadd.f32 %v1526, %v1496
        %v1528 = vadd.f32 %v1527, %v1497
        %v1529 = vadd.f32 %v1528, %v1498
        %v1530 = vadd.f32 %v1529, %v1499
        %v1531 = vadd.f32 %v1530, %v1500
        %v1532 = vadd.f32 %v1531, %v1501
        %v1533 = vadd.f32 %v1532, %v1502
        %v1534 = vadd.f32 %v1533, %v1503
        %v1535 = vadd.f32 %v1534, %v1504
        %v1536 = vadd.f32 %v1535, %v1505
        %v1537 = vadd.f32 %v1536, %v1506
        %v1538 = vadd.f32 %v1537, %v1507
        %v1539 = vadd.f32 %v1538, %v1508
        %v1540 = vadd.f32 %v1539, %v1509
        %v1541 = vadd.f32 %v1540, %v1510
        %v1542 = vrot.slane %v1541, 4
        %v1543 = vadd.f32 %v1541, %v1542
        %v1544 = vrot.slane %v1543, 2
        %v1545 = vadd.f32 %v1543, %v1544
        %v1546 = vrot.slane %v1545, 1
        %v1547 = vadd.f32 %v1545, %v1546
        %v1548 = vadd.f32 %v1230, %v1547
        %v1549 = vmul.f32 %v1548, 0.0009765625
        %1550 = vmatprep.subr.mxu0 0.0
        %1551 = vmatpush1.msra.mxu0 %v248
        %1552 = vmatprep.subr.mxu0 0.0
        %1553 = vmatpush1.msra.mxu0 %v249
        %1554 = vmatprep.subr.mxu0 0.0
        %1555 = vmatpush1.msra.mxu0 %v250
        %1556 = vmatprep.subr.mxu0 0.0
        %1557 = vmatpush1.msra.mxu0 %v251
        %1558 = vmatprep.subr.mxu0 0.0
        %1559 = vmatpush1.msra.mxu0 %v252
        %1560 = vmatprep.subr.mxu0 0.0
        %1561 = vmatpush1.msra.mxu0 %v253
        %1562 = vmatprep.subr.mxu0 0.0
        %1563 = vmatpush1.msra.mxu0 %v254
        %1564 = vmatprep.subr.mxu0 0.0
        %1565 = vmatpush1.msra.mxu0 %v255
        %1566 = vmatprep.subr.mxu0 0.0
        %1567 = vmatpush1.msra.mxu0 %v256
        %1568 = vmatprep.subr.mxu0 0.0
        %1569 = vmatpush1.msra.mxu0 %v257
        %1570 = vmatprep.subr.mxu0 0.0
        %1571 = vmatpush1.msra.mxu0 %v258
        %1572 = vmatprep.subr.mxu0 0.0
        %1573 = vmatpush1.msra.mxu0 %v259
        %1574 = vmatprep.subr.mxu0 0.0
        %1575 = vmatpush1.msra.mxu0 %v260
        %1576 = vmatprep.subr.mxu0 0.0
        %1577 = vmatpush1.msra.mxu0 %v261
        %1578 = vmatprep.subr.mxu0 0.0
        %1579 = vmatpush1.msra.mxu0 %v262
        %1580 = vmatprep.subr.mxu0 0.0
        %1581 = vmatpush1.msra.mxu0 %v263
        %1582 = vmatprep.subr.mxu0 0.0
        %1583 = vmatpush1.msra.mxu0 0.0
        %1584 = vmatprep.subr.mxu0 0.0
        %1585 = vmatpush1.msra.mxu0 0.0
        %1586 = vmatprep.subr.mxu0 0.0
        %1587 = vmatpush1.msra.mxu0 0.0
        %1588 = vmatprep.subr.mxu0 0.0
        %1589 = vmatpush1.msra.mxu0 0.0
        %1590 = vmatprep.subr.mxu0 0.0
        %1591 = vmatpush1.msra.mxu0 0.0
        %1592 = vmatprep.subr.mxu0 0.0
        %1593 = vmatpush1.msra.mxu0 0.0
        %1594 = vmatprep.subr.mxu0 0.0
        %1595 = vmatpush1.msra.mxu0 0.0
        %1596 = vmatprep.subr.mxu0 0.0
        %1597 = vmatpush1.msra.mxu0 0.0
        %1598 = vmatprep.subr.mxu0 0.0
        %1599 = vmatpush1.msra.mxu0 0.0
        %1600 = vmatprep.subr.mxu0 0.0
        %1601 = vmatpush1.msra.mxu0 0.0
        %1602 = vmatprep.subr.mxu0 0.0
        %1603 = vmatpush1.msra.mxu0 0.0
        %1604 = vmatprep.subr.mxu0 0.0
        %1605 = vmatpush1.msra.mxu0 0.0
        %1606 = vmatprep.subr.mxu0 0.0
        %1607 = vmatpush1.msra.mxu0 0.0
        %1608 = vmatprep.subr.mxu0 0.0
        %1609 = vmatpush1.msra.mxu0 0.0
        %1610 = vmatprep.subr.mxu0 0.0
        %1611 = vmatpush1.msra.mxu0 0.0
        %1612 = vmatprep.subr.mxu0 0.0
        %1613 = vmatpush1.msra.mxu0 0.0
        %1614 = vmatprep.mubr.f32.mxu0 0.0
        %1615 = vmatmul.mubr.f32.gmra.mrb[0].mxu0 %v1549
        %v1616 = vpop.f32.mrb[0].mxu0
        %v1617 = vadd.f32 %v264, %v1616
        %v1618 = vpop.f32.mrb[0].mxu0
        %1619 = vdwg.mxu0
        %1620 = vst [vmem:[%s216] sm:$0x1] %v1617
        %s1621 = sand.u32 %s137, 1
        %s1622 = scalar_lea.sflag [#allocation3], %s1621
        %s1623 = sand.u32 %s137, 1
        %s1624 = scalar_lea.vmem [#allocation2], %s1623
        // Predicated region
        $region41: #{tpu_custom_call.1} parent=39 // pred_check
          %p1625 = pneg %p147
        $region42: #{tpu_custom_call.1} parent=39 // pred_check_branch
          %1627 = sbr.rel (%p1625) target = $region44
        $region43: #{tpu_custom_call.1} parent=39 // pred_region
          %s1629 = ssub.s32 16, 16
          %1630 = vsyncadd %s1622, %s1629
          %s1631 = smul.addr %s19, 16
          %s1632 = scalar_lea.hbm %s5, %s1631
          %s1634 = sshll.u32 %s1624, 4
          %s1635 = int_to_ptr.vmem [resolvable:$true] %s1634
          %1637 = dma.vmem_to_hbm [thread:$0]  %s1635, 16, %s1632, %s1622
        $region44: #{tpu_custom_call.1} parent=39 // pred_fallthru
          _
      $region40: #{tpu_custom_call.1} parent=5 // pred_fallthru
        _
      %p1638 = scmp.le.s32.totalorder 2, %s14
      // Predicated region
      $region45: #{tpu_custom_call.1} parent=5 // pred_check
        %p1639 = pneg %p1638
      $region46: #{tpu_custom_call.1} parent=5 // pred_check_branch
        %1641 = sbr.rel (%p1639) target = $region48
      $region47: #{tpu_custom_call.1} parent=5 // pred_region
        %s1642 = ssub.s32 %s14, 2
        // Predicated region
        $region49: #{tpu_custom_call.1} parent=47 // pred_check
          %p1643 = pneg %p153
        $region50: #{tpu_custom_call.1} parent=47 // pred_check_branch
          %1645 = sbr.rel (%p1643) target = $region52
        $region51: #{tpu_custom_call.1} parent=47 // pred_region
          %s1646 = sand.u32 %s138, 1
          %s1647 = scalar_lea.sflag [#allocation3], %s1646
          %s1648 = sand.u32 %s138, 1
          %s1649 = scalar_lea.vmem [#allocation2], %s1648
          %1650 = dma.done %s1647, 16
        $region52: #{tpu_custom_call.1} parent=47 // pred_fallthru
          _
      $region48: #{tpu_custom_call.1} parent=5 // pred_fallthru
        _
    $region6: #{tpu_custom_call.1} parent=1 // loop_footer
      %s18 = sadd.s32 1, %s14
    $region7: #{tpu_custom_call.1} parent=1 // loop_footer_branch
      %13 = sbr.rel target = $region3
    $region8: #{tpu_custom_call.1} parent=1 // loop_exit
      _
    %1651 = vsyncpa [#allocation3], 1
    %s1652 = scalar_lea.sflag [#allocation3], 1
    %1653 = vsyncpa %s1652, 1

</llo_original>
